<compile_context>
chip_gen: v7x
topology: tpu7x:2x2x1
jax: 0.10.0
libtpu: 0.0.40
codegen_flags: <defaults>
</compile_context>

<pallas_src>
from functools import partial

import jax
import jax.numpy as jnp
from jax.experimental import pallas as pl
from jax.experimental.pallas import tpu as pltpu

EPS = 1e-5  # torch.nn.LayerNorm default


def _layernorm(x, gamma, beta):
    mu = jnp.mean(x, axis=-1, keepdims=True)
    var = jnp.mean((x - mu) ** 2, axis=-1, keepdims=True)
    return (x - mu) * jax.lax.rsqrt(var + EPS) * gamma + beta


def encoder_block_kernel(num_heads, matmul_dtype,
                         xf_ref, xq_ref,
                         wq_ref, bq_ref, wkv_ref, bkv_ref,
                         wo_ref, bo_ref,
                         g1_ref, beta1_ref,
                         w1_ref, bf1_ref, w2_ref, bf2_ref,
                         g2_ref, beta2_ref,
                         out_ref):
    f32 = jnp.float32
    xf = xf_ref[0]                       # (S, E)  full sequence -> keys/values
    xq = xq_ref[0]                       # (TQ, E) query tile / residual
    S, E = xf.shape
    TQ = xq.shape[0]
    hd = E // num_heads
    scale = 1.0 / float(hd) ** 0.5

    def mm(a, b):                        # full-width MXU matmul, f32 accumulate
        return jnp.dot(a.astype(matmul_dtype), b.astype(matmul_dtype),
                       preferred_element_type=f32)

    # --- projections: Q on the query tile, K|V fused into one wide matmul ---
    q = mm(xq, wq_ref[...]) + bq_ref[...].astype(f32)          # (TQ, E)
    kv = mm(xf, wkv_ref[...]) + bkv_ref[...].astype(f32)       # (S, 2E)
    k = kv[:, :E]                                               # (S, E)
    v = kv[:, E:]                                               # (S, E)

    # Head-major relayout (one cheap lane-slice copy per head); the matmuls
    # below are then a single head-batched contraction instead of per-head
    # hd-wide matmuls.
    qh = jnp.stack([q[:, h * hd:(h + 1) * hd] for h in range(num_heads)], 0)  # (H,TQ,hd)
    kh = jnp.stack([k[:, h * hd:(h + 1) * hd] for h in range(num_heads)], 0)  # (H,S,hd)
    vh = jnp.stack([v[:, h * hd:(h + 1) * hd] for h in range(num_heads)], 0)  # (H,S,hd)

    s = jnp.einsum('hqd,hkd->hqk',
                   qh.astype(matmul_dtype), kh.astype(matmul_dtype),
                   preferred_element_type=f32) * scale                         # (H,TQ,S)
    s = s - jnp.max(s, axis=-1, keepdims=True)
    p = jnp.exp(s)
    # softmax denominator on the EUP instead of a VPU divide
    p = p * pl.reciprocal(jnp.sum(p, axis=-1, keepdims=True), approx=True)

    ctx = jnp.einsum('hqk,hkd->hqd',
                     p.astype(matmul_dtype), vh.astype(matmul_dtype),
                     preferred_element_type=f32)                               # (H,TQ,hd)
    attn = jnp.concatenate([ctx[h] for h in range(num_heads)], axis=-1)        # (TQ,E)
    attn = mm(attn, wo_ref[...]) + bo_ref[...].astype(f32)

    # --- residual + LayerNorm 1 (dropout = identity) ------------------------
    x1 = _layernorm(attn + xq.astype(f32),
                    g1_ref[...].astype(f32), beta1_ref[...].astype(f32))

    # --- feed-forward: Linear -> ReLU -> Linear ------------------------------
    h1 = jnp.maximum(mm(x1, w1_ref[...]) + bf1_ref[...].astype(f32), 0.0)
    ff = mm(h1, w2_ref[...]) + bf2_ref[...].astype(f32)

    # --- residual + LayerNorm 2 ----------------------------------------------
    x2 = _layernorm(ff + x1,
                    g2_ref[...].astype(f32), beta2_ref[...].astype(f32))
    out_ref[0] = x2.astype(out_ref.dtype)


def encoder_block(x, params, num_heads, *, tq=None, matmul_dtype=jnp.float32):
    B, S, E = x.shape
    Hf = params["w1"].shape[1]
    assert E % num_heads == 0, "embed_dim must be divisible by num_heads"

    # Query-tile size: bounds live VMEM to O(TQ*S + TQ*Hf) per grid step
    # (critical for long S on v7x's 64 MiB VMEM). One tile for small S.
    if tq is None:
        tq = S if S <= 256 else 256
    assert S % tq == 0 and (tq == S or tq % 8 == 0)
    n_tiles = S // tq

    # Fuse K/V projection weights once on the host side: one (E, 2E) matmul
    # per grid step instead of two (E, E) matmuls.
    w_kv = jnp.concatenate([params["wk"], params["wv"]], axis=1)   # (E, 2E)
    b_kv = jnp.concatenate([params["bk"], params["bv"]], axis=1)   # (1, 2E)

    def const_spec(shape):
        return pl.BlockSpec(shape, lambda b, t: (0,) * len(shape))

    in_specs = [
        pl.BlockSpec((1, S, E), lambda b, t: (b, 0, 0)),    # x full slab (K/V)
        pl.BlockSpec((1, tq, E), lambda b, t: (b, t, 0)),   # x query tile
        const_spec((E, E)), const_spec((1, E)),             # Wq, bq
        const_spec((E, 2 * E)), const_spec((1, 2 * E)),     # W_kv, b_kv (fused)
        const_spec((E, E)), const_spec((1, E)),             # Wo, bo
        const_spec((1, E)), const_spec((1, E)),             # gamma1, beta1
        const_spec((E, Hf)), const_spec((1, Hf)),           # W1, b1
        const_spec((Hf, E)), const_spec((1, E)),            # W2, b2
        const_spec((1, E)), const_spec((1, E)),             # gamma2, beta2
    ]
    args = (x, x,
            params["wq"], params["bq"], w_kv, b_kv,
            params["wo"], params["bo"],
            params["g1"], params["beta1"],
            params["w1"], params["bf1"], params["w2"], params["bf2"],
            params["g2"], params["beta2"])

    # Explicit scoped-VMEM budget: 2x (pipeline double-buffering) for the
    # HBM-backed operands plus an estimate of live f32 intermediates.
    w_bytes = (4 * E * E + 2 * E * Hf) * jnp.dtype(params["wq"].dtype).itemsize
    io_bytes = (S * E + 2 * tq * E) * jnp.dtype(x.dtype).itemsize
    live_bytes = (4 * S * E + 8 * tq * E
                  + 2 * num_heads * tq * S + 2 * tq * Hf) * 4
    vmem_limit = 2 * (w_bytes + io_bytes) + live_bytes + (4 << 20)
    vmem_limit = int(min(max(vmem_limit, 16 << 20), 64 << 20))  # v7x-safe cap

    return pl.pallas_call(
        partial(encoder_block_kernel, num_heads, matmul_dtype),
        out_shape=jax.ShapeDtypeStruct((B, S, E), x.dtype),
        grid_spec=pltpu.PrefetchScalarGridSpec(
            num_scalar_prefetch=0,
            grid=(B, n_tiles),
            in_specs=in_specs,
            out_specs=pl.BlockSpec((1, tq, E), lambda b, t: (b, t, 0)),
        ),
        compiler_params=pltpu.CompilerParams(
            dimension_semantics=("parallel", "parallel"),
            vmem_limit_bytes=vmem_limit),
    )(*args)


# ----------------------- pure-JAX reference --------------------------------
def encoder_block_ref(x, params, num_heads):
    B, S, E = x.shape
    hd = E // num_heads
    scale = 1.0 / float(hd) ** 0.5

    def one(xb):
        q = xb @ params["wq"] + params["bq"]
        k = xb @ params["wk"] + params["bk"]
        v = xb @ params["wv"] + params["bv"]
        outs = []
        for h in range(num_heads):
            qh, kh, vh = (t[:, h * hd:(h + 1) * hd] for t in (q, k, v))
            p = jax.nn.softmax((qh @ kh.T) * scale, axis=-1)
            outs.append(p @ vh)
        a = jnp.concatenate(outs, -1) @ params["wo"] + params["bo"]
        x1 = _layernorm(a + xb, params["g1"], params["beta1"])
        hmid = jnp.maximum(x1 @ params["w1"] + params["bf1"], 0.0)
        ff = hmid @ params["w2"] + params["bf2"]
        return _layernorm(ff + x1, params["g2"], params["beta2"])

    return jax.vmap(one)(x)


if __name__ == "__main__":
    B, S, E, NH = 2, 8, 32, 4
    Hf = 4 * E

    key = jax.random.PRNGKey(0)
    ks = jax.random.split(key, 16)
    init = lambda k, shape: jax.random.normal(k, shape, jnp.float32) * 0.02

    params = {
        "wq": init(ks[0], (E, E)), "bq": init(ks[1], (1, E)),
        "wk": init(ks[2], (E, E)), "bk": init(ks[3], (1, E)),
        "wv": init(ks[4], (E, E)), "bv": init(ks[5], (1, E)),
        "wo": init(ks[6], (E, E)), "bo": init(ks[7], (1, E)),
        "g1": jnp.ones((1, E), jnp.float32), "beta1": jnp.zeros((1, E), jnp.float32),
        "w1": init(ks[8], (E, Hf)), "bf1": init(ks[9], (1, Hf)),
        "w2": init(ks[10], (Hf, E)), "bf2": init(ks[11], (1, E)),
        "g2": jnp.ones((1, E), jnp.float32), "beta2": jnp.zeros((1, E), jnp.float32),
    }
    x = jax.random.normal(ks[15], (B, S, E), jnp.float32)

    ref = encoder_block_ref(x, params, NH)

    # f32 matmuls (only deviation from reference is the approx-EUP reciprocal)
    out = encoder_block(x, params, NH)
    jax.block_until_ready(out)
    assert out.shape == (B, S, E)
    assert jnp.allclose(out, ref, atol=5e-3, rtol=5e-3), "f32 mismatch vs reference"

    # bf16 weights / matmul operands (v6e / v7x fast path); f32 accumulation,
    # f32 LayerNorm + softmax + residuals.
    params_bf16 = dict(params)
    for name in ("wq", "wk", "wv", "wo", "w1", "w2"):
        params_bf16[name] = params[name].astype(jnp.bfloat16)
    out_bf16 = encoder_block(x, params_bf16, NH, matmul_dtype=jnp.bfloat16)
    jax.block_until_ready(out_bf16)
    assert jnp.allclose(out_bf16, ref, atol=2e-2, rtol=2e-2), "bf16 mismatch vs reference"

    print("KERNEL_OK")
</pallas_src>

<mosaic_0001>
module attributes {stable_mosaic.version = 11 : i64} {
  func.func @encoder_block_kernel(%arg0: i32, %arg1: i32, %arg2: memref<1x8x32xf32, #tpu.memory_space<vmem>>, %arg3: memref<1x8x32xf32, #tpu.memory_space<vmem>>, %arg4: memref<32x32xf32, #tpu.memory_space<vmem>>, %arg5: memref<1x32xf32, #tpu.memory_space<vmem>>, %arg6: memref<32x64xf32, #tpu.memory_space<vmem>>, %arg7: memref<1x64xf32, #tpu.memory_space<vmem>>, %arg8: memref<32x32xf32, #tpu.memory_space<vmem>>, %arg9: memref<1x32xf32, #tpu.memory_space<vmem>>, %arg10: memref<1x32xf32, #tpu.memory_space<vmem>>, %arg11: memref<1x32xf32, #tpu.memory_space<vmem>>, %arg12: memref<32x128xf32, #tpu.memory_space<vmem>>, %arg13: memref<1x128xf32, #tpu.memory_space<vmem>>, %arg14: memref<128x32xf32, #tpu.memory_space<vmem>>, %arg15: memref<1x32xf32, #tpu.memory_space<vmem>>, %arg16: memref<1x32xf32, #tpu.memory_space<vmem>>, %arg17: memref<1x32xf32, #tpu.memory_space<vmem>>, %arg18: memref<1x8x32xf32, #tpu.memory_space<vmem>>) attributes {dimension_semantics = [#tpu.dimension_semantics<parallel>, #tpu.dimension_semantics<parallel>], iteration_bounds = array<i64: 2, 1>, scalar_prefetch = 0 : i64, scratch_operands = 0 : i64, tpu.core_type = #tpu.core_type<tc>, window_params = [{transform_indices = @transform_0, window_bounds = array<i64: 1, 8, 32>}, {transform_indices = @transform_1, window_bounds = array<i64: 1, 8, 32>}, {pipeline_mode = #tpu.pipeline_mode<synchronous>, transform_indices = @transform_2, window_bounds = array<i64: 32, 32>}, {pipeline_mode = #tpu.pipeline_mode<synchronous>, transform_indices = @transform_3, window_bounds = array<i64: 1, 32>}, {pipeline_mode = #tpu.pipeline_mode<synchronous>, transform_indices = @transform_4, window_bounds = array<i64: 32, 64>}, {pipeline_mode = #tpu.pipeline_mode<synchronous>, transform_indices = @transform_5, window_bounds = array<i64: 1, 64>}, {pipeline_mode = #tpu.pipeline_mode<synchronous>, transform_indices = @transform_6, window_bounds = array<i64: 32, 32>}, {pipeline_mode = #tpu.pipeline_mode<synchronous>, transform_indices = @transform_7, window_bounds = array<i64: 1, 32>}, {pipeline_mode = #tpu.pipeline_mode<synchronous>, transform_indices = @transform_8, window_bounds = array<i64: 1, 32>}, {pipeline_mode = #tpu.pipeline_mode<synchronous>, transform_indices = @transform_9, window_bounds = array<i64: 1, 32>}, {pipeline_mode = #tpu.pipeline_mode<synchronous>, transform_indices = @transform_10, window_bounds = array<i64: 32, 128>}, {pipeline_mode = #tpu.pipeline_mode<synchronous>, transform_indices = @transform_11, window_bounds = array<i64: 1, 128>}, {pipeline_mode = #tpu.pipeline_mode<synchronous>, transform_indices = @transform_12, window_bounds = array<i64: 128, 32>}, {pipeline_mode = #tpu.pipeline_mode<synchronous>, transform_indices = @transform_13, window_bounds = array<i64: 1, 32>}, {pipeline_mode = #tpu.pipeline_mode<synchronous>, transform_indices = @transform_14, window_bounds = array<i64: 1, 32>}, {pipeline_mode = #tpu.pipeline_mode<synchronous>, transform_indices = @transform_15, window_bounds = array<i64: 1, 32>}, {transform_indices = @transform_16, window_bounds = array<i64: 1, 8, 32>}]} {
    %c0 = arith.constant 0 : index
    %c0_0 = arith.constant 0 : index
    %c0_1 = arith.constant 0 : index
    %0 = vector.load %arg2[%c0, %c0_0, %c0_1] : memref<1x8x32xf32, #tpu.memory_space<vmem>>, vector<1x8x32xf32>
    %1 = vector.shape_cast %0 : vector<1x8x32xf32> to vector<8x32xf32>
    %c0_2 = arith.constant 0 : index
    %c0_3 = arith.constant 0 : index
    %c0_4 = arith.constant 0 : index
    %2 = vector.load %arg3[%c0_2, %c0_3, %c0_4] : memref<1x8x32xf32, #tpu.memory_space<vmem>>, vector<1x8x32xf32>
    %3 = vector.shape_cast %2 : vector<1x8x32xf32> to vector<8x32xf32>
    %c0_5 = arith.constant 0 : index
    %c0_6 = arith.constant 0 : index
    %4 = vector.load %arg4[%c0_5, %c0_6] : memref<32x32xf32, #tpu.memory_space<vmem>>, vector<32x32xf32>
    %cst = arith.constant dense<0.000000e+00> : vector<8x32xf32>
    %5 = tpu.matmul %3, %4, %cst {dimension_numbers = #tpu.dot_dimension_numbers<[1], [0], [0], [1], [0, 0, 1, 1], [], []>} : vector<8x32xf32>, vector<32x32xf32>, vector<8x32xf32> -> vector<8x32xf32>
    %c0_7 = arith.constant 0 : index
    %c0_8 = arith.constant 0 : index
    %6 = vector.load %arg5[%c0_7, %c0_8] : memref<1x32xf32, #tpu.memory_space<vmem>>, vector<1x32xf32>
    %7 = vector.broadcast %6 : vector<1x32xf32> to vector<8x32xf32>
    %8 = arith.addf %5, %7 : vector<8x32xf32>
    %c0_9 = arith.constant 0 : index
    %c0_10 = arith.constant 0 : index
    %9 = vector.load %arg6[%c0_9, %c0_10] : memref<32x64xf32, #tpu.memory_space<vmem>>, vector<32x64xf32>
    %cst_11 = arith.constant dense<0.000000e+00> : vector<8x64xf32>
    %10 = tpu.matmul %1, %9, %cst_11 {dimension_numbers = #tpu.dot_dimension_numbers<[1], [0], [0], [1], [0, 0, 1, 1], [], []>} : vector<8x32xf32>, vector<32x64xf32>, vector<8x64xf32> -> vector<8x64xf32>
    %c0_12 = arith.constant 0 : index
    %c0_13 = arith.constant 0 : index
    %11 = vector.load %arg7[%c0_12, %c0_13] : memref<1x64xf32, #tpu.memory_space<vmem>>, vector<1x64xf32>
    %12 = vector.broadcast %11 : vector<1x64xf32> to vector<8x64xf32>
    %13 = arith.addf %10, %12 : vector<8x64xf32>
    %14 = vector.extract_strided_slice %13 {offsets = [0, 0], sizes = [8, 32], strides = [1, 1]} : vector<8x64xf32> to vector<8x32xf32>
    %15 = vector.extract_strided_slice %13 {offsets = [0, 32], sizes = [8, 32], strides = [1, 1]} : vector<8x64xf32> to vector<8x32xf32>
    %16 = vector.extract_strided_slice %8 {offsets = [0, 0], sizes = [8, 8], strides = [1, 1]} : vector<8x32xf32> to vector<8x8xf32>
    %17 = vector.extract_strided_slice %8 {offsets = [0, 8], sizes = [8, 8], strides = [1, 1]} : vector<8x32xf32> to vector<8x8xf32>
    %18 = vector.extract_strided_slice %8 {offsets = [0, 16], sizes = [8, 8], strides = [1, 1]} : vector<8x32xf32> to vector<8x8xf32>
    %19 = vector.extract_strided_slice %8 {offsets = [0, 24], sizes = [8, 8], strides = [1, 1]} : vector<8x32xf32> to vector<8x8xf32>
    %20 = vector.shape_cast %16 : vector<8x8xf32> to vector<1x8x8xf32>
    %21 = vector.shape_cast %17 : vector<8x8xf32> to vector<1x8x8xf32>
    %22 = vector.shape_cast %18 : vector<8x8xf32> to vector<1x8x8xf32>
    %23 = vector.shape_cast %19 : vector<8x8xf32> to vector<1x8x8xf32>
    %24 = tpu.concatenate %20, %21, %22, %23 in 0 : vector<1x8x8xf32>, vector<1x8x8xf32>, vector<1x8x8xf32>, vector<1x8x8xf32> -> vector<4x8x8xf32>
    %25 = vector.extract_strided_slice %14 {offsets = [0, 0], sizes = [8, 8], strides = [1, 1]} : vector<8x32xf32> to vector<8x8xf32>
    %26 = vector.extract_strided_slice %14 {offsets = [0, 8], sizes = [8, 8], strides = [1, 1]} : vector<8x32xf32> to vector<8x8xf32>
    %27 = vector.extract_strided_slice %14 {offsets = [0, 16], sizes = [8, 8], strides = [1, 1]} : vector<8x32xf32> to vector<8x8xf32>
    %28 = vector.extract_strided_slice %14 {offsets = [0, 24], sizes = [8, 8], strides = [1, 1]} : vector<8x32xf32> to vector<8x8xf32>
    %29 = vector.shape_cast %25 : vector<8x8xf32> to vector<1x8x8xf32>
    %30 = vector.shape_cast %26 : vector<8x8xf32> to vector<1x8x8xf32>
    %31 = vector.shape_cast %27 : vector<8x8xf32> to vector<1x8x8xf32>
    %32 = vector.shape_cast %28 : vector<8x8xf32> to vector<1x8x8xf32>
    %33 = tpu.concatenate %29, %30, %31, %32 in 0 : vector<1x8x8xf32>, vector<1x8x8xf32>, vector<1x8x8xf32>, vector<1x8x8xf32> -> vector<4x8x8xf32>
    %34 = vector.extract_strided_slice %15 {offsets = [0, 0], sizes = [8, 8], strides = [1, 1]} : vector<8x32xf32> to vector<8x8xf32>
    %35 = vector.extract_strided_slice %15 {offsets = [0, 8], sizes = [8, 8], strides = [1, 1]} : vector<8x32xf32> to vector<8x8xf32>
    %36 = vector.extract_strided_slice %15 {offsets = [0, 16], sizes = [8, 8], strides = [1, 1]} : vector<8x32xf32> to vector<8x8xf32>
    %37 = vector.extract_strided_slice %15 {offsets = [0, 24], sizes = [8, 8], strides = [1, 1]} : vector<8x32xf32> to vector<8x8xf32>
    %38 = vector.shape_cast %34 : vector<8x8xf32> to vector<1x8x8xf32>
    %39 = vector.shape_cast %35 : vector<8x8xf32> to vector<1x8x8xf32>
    %40 = vector.shape_cast %36 : vector<8x8xf32> to vector<1x8x8xf32>
    %41 = vector.shape_cast %37 : vector<8x8xf32> to vector<1x8x8xf32>
    %42 = tpu.concatenate %38, %39, %40, %41 in 0 : vector<1x8x8xf32>, vector<1x8x8xf32>, vector<1x8x8xf32>, vector<1x8x8xf32> -> vector<4x8x8xf32>
    "tpu.trace_start"() <{level = 10 : i32, message = "hqd,hkd->hqk"}> : () -> ()
    %cst_14 = arith.constant dense<0.000000e+00> : vector<4x8x8xf32>
    %43 = tpu.matmul %24, %33, %cst_14 {dimension_numbers = #tpu.dot_dimension_numbers<[2], [2], [1], [1], [0, 0, 0, 1, 1, 1], [0], [0]>} : vector<4x8x8xf32>, vector<4x8x8xf32>, vector<4x8x8xf32> -> vector<4x8x8xf32>
    "tpu.trace_stop"() : () -> ()
    %cst_15 = arith.constant 0.353553385 : f32
    %44 = vector.broadcast %cst_15 : f32 to vector<4x8x8xf32>
    %45 = arith.mulf %43, %44 : vector<4x8x8xf32>
    %cst_16 = arith.constant dense<0xFF800000> : vector<4x8xf32>
    %46 = vector.multi_reduction <maximumf>, %45, %cst_16 [2] : vector<4x8x8xf32> to vector<4x8xf32>
    %47 = vector.shape_cast %46 : vector<4x8xf32> to vector<4x8x1xf32>
    %48 = vector.broadcast %47 : vector<4x8x1xf32> to vector<4x8x8xf32>
    %49 = arith.subf %45, %48 : vector<4x8x8xf32>
    %50 = math.exp %49 : vector<4x8x8xf32>
    %cst_17 = arith.constant dense<0.000000e+00> : vector<4x8xf32>
    %51 = vector.multi_reduction <add>, %50, %cst_17 [2] : vector<4x8x8xf32> to vector<4x8xf32>
    %52 = vector.shape_cast %51 : vector<4x8xf32> to vector<4x8x1xf32>
    %53 = tpu.reciprocal %52 {approx = true} : vector<4x8x1xf32> -> vector<4x8x1xf32>
    %54 = vector.broadcast %53 : vector<4x8x1xf32> to vector<4x8x8xf32>
    %55 = arith.mulf %50, %54 : vector<4x8x8xf32>
    "tpu.trace_start"() <{level = 10 : i32, message = "hqk,hkd->hqd"}> : () -> ()
    %cst_18 = arith.constant dense<0.000000e+00> : vector<4x8x8xf32>
    %56 = tpu.matmul %55, %42, %cst_18 {dimension_numbers = #tpu.dot_dimension_numbers<[2], [1], [1], [2], [0, 0, 0, 1, 1, 2], [0], [0]>} : vector<4x8x8xf32>, vector<4x8x8xf32>, vector<4x8x8xf32> -> vector<4x8x8xf32>
    "tpu.trace_stop"() : () -> ()
    %57 = vector.extract_strided_slice %56 {offsets = [0, 0, 0], sizes = [1, 8, 8], strides = [1, 1, 1]} : vector<4x8x8xf32> to vector<1x8x8xf32>
    %58 = vector.shape_cast %57 : vector<1x8x8xf32> to vector<8x8xf32>
    %59 = vector.extract_strided_slice %56 {offsets = [1, 0, 0], sizes = [1, 8, 8], strides = [1, 1, 1]} : vector<4x8x8xf32> to vector<1x8x8xf32>
    %60 = vector.shape_cast %59 : vector<1x8x8xf32> to vector<8x8xf32>
    %61 = vector.extract_strided_slice %56 {offsets = [2, 0, 0], sizes = [1, 8, 8], strides = [1, 1, 1]} : vector<4x8x8xf32> to vector<1x8x8xf32>
    %62 = vector.shape_cast %61 : vector<1x8x8xf32> to vector<8x8xf32>
    %63 = vector.extract_strided_slice %56 {offsets = [3, 0, 0], sizes = [1, 8, 8], strides = [1, 1, 1]} : vector<4x8x8xf32> to vector<1x8x8xf32>
    %64 = vector.shape_cast %63 : vector<1x8x8xf32> to vector<8x8xf32>
    %65 = tpu.concatenate %58, %60, %62, %64 in 1 : vector<8x8xf32>, vector<8x8xf32>, vector<8x8xf32>, vector<8x8xf32> -> vector<8x32xf32>
    %c0_19 = arith.constant 0 : index
    %c0_20 = arith.constant 0 : index
    %66 = vector.load %arg8[%c0_19, %c0_20] : memref<32x32xf32, #tpu.memory_space<vmem>>, vector<32x32xf32>
    %cst_21 = arith.constant dense<0.000000e+00> : vector<8x32xf32>
    %67 = tpu.matmul %65, %66, %cst_21 {dimension_numbers = #tpu.dot_dimension_numbers<[1], [0], [0], [1], [0, 0, 1, 1], [], []>} : vector<8x32xf32>, vector<32x32xf32>, vector<8x32xf32> -> vector<8x32xf32>
    %c0_22 = arith.constant 0 : index
    %c0_23 = arith.constant 0 : index
    %68 = vector.load %arg9[%c0_22, %c0_23] : memref<1x32xf32, #tpu.memory_space<vmem>>, vector<1x32xf32>
    %69 = vector.broadcast %68 : vector<1x32xf32> to vector<8x32xf32>
    %70 = arith.addf %67, %69 : vector<8x32xf32>
    %71 = arith.addf %70, %3 : vector<8x32xf32>
    %c0_24 = arith.constant 0 : index
    %c0_25 = arith.constant 0 : index
    %72 = vector.load %arg10[%c0_24, %c0_25] : memref<1x32xf32, #tpu.memory_space<vmem>>, vector<1x32xf32>
    %c0_26 = arith.constant 0 : index
    %c0_27 = arith.constant 0 : index
    %73 = vector.load %arg11[%c0_26, %c0_27] : memref<1x32xf32, #tpu.memory_space<vmem>>, vector<1x32xf32>
    %cst_28 = arith.constant dense<0.000000e+00> : vector<8xf32>
    %74 = vector.multi_reduction <add>, %71, %cst_28 [1] : vector<8x32xf32> to vector<8xf32>
    %75 = vector.shape_cast %74 : vector<8xf32> to vector<8x1xf32>
    %cst_29 = arith.constant 3.200000e+01 : f32
    %76 = vector.broadcast %cst_29 : f32 to vector<8x1xf32>
    %77 = arith.divf %75, %76 : vector<8x1xf32>
    %78 = vector.broadcast %77 : vector<8x1xf32> to vector<8x32xf32>
    %79 = arith.subf %71, %78 : vector<8x32xf32>
    %80 = arith.mulf %79, %79 : vector<8x32xf32>
    %cst_30 = arith.constant dense<0.000000e+00> : vector<8xf32>
    %81 = vector.multi_reduction <add>, %80, %cst_30 [1] : vector<8x32xf32> to vector<8xf32>
    %82 = vector.shape_cast %81 : vector<8xf32> to vector<8x1xf32>
    %cst_31 = arith.constant 3.200000e+01 : f32
    %83 = vector.broadcast %cst_31 : f32 to vector<8x1xf32>
    %84 = arith.divf %82, %83 : vector<8x1xf32>
    %85 = vector.broadcast %77 : vector<8x1xf32> to vector<8x32xf32>
    %86 = arith.subf %71, %85 : vector<8x32xf32>
    %cst_32 = arith.constant 9.99999974E-6 : f32
    %87 = vector.broadcast %cst_32 : f32 to vector<8x1xf32>
    %88 = arith.addf %84, %87 : vector<8x1xf32>
    %89 = math.rsqrt %88 : vector<8x1xf32>
    %90 = vector.broadcast %89 : vector<8x1xf32> to vector<8x32xf32>
    %91 = arith.mulf %86, %90 : vector<8x32xf32>
    %92 = vector.broadcast %72 : vector<1x32xf32> to vector<8x32xf32>
    %93 = arith.mulf %91, %92 : vector<8x32xf32>
    %94 = vector.broadcast %73 : vector<1x32xf32> to vector<8x32xf32>
    %95 = arith.addf %93, %94 : vector<8x32xf32>
    %c0_33 = arith.constant 0 : index
    %c0_34 = arith.constant 0 : index
    %96 = vector.load %arg12[%c0_33, %c0_34] : memref<32x128xf32, #tpu.memory_space<vmem>>, vector<32x128xf32>
    %cst_35 = arith.constant dense<0.000000e+00> : vector<8x128xf32>
    %97 = tpu.matmul %95, %96, %cst_35 {dimension_numbers = #tpu.dot_dimension_numbers<[1], [0], [0], [1], [0, 0, 1, 1], [], []>} : vector<8x32xf32>, vector<32x128xf32>, vector<8x128xf32> -> vector<8x128xf32>
    %c0_36 = arith.constant 0 : index
    %c0_37 = arith.constant 0 : index
    %98 = vector.load %arg13[%c0_36, %c0_37] : memref<1x128xf32, #tpu.memory_space<vmem>>, vector<1x128xf32>
    %99 = vector.broadcast %98 : vector<1x128xf32> to vector<8x128xf32>
    %100 = arith.addf %97, %99 : vector<8x128xf32>
    %cst_38 = arith.constant 0.000000e+00 : f32
    %101 = vector.broadcast %cst_38 : f32 to vector<8x128xf32>
    %102 = arith.maximumf %100, %101 : vector<8x128xf32>
    %c0_39 = arith.constant 0 : index
    %c0_40 = arith.constant 0 : index
    %103 = vector.load %arg14[%c0_39, %c0_40] : memref<128x32xf32, #tpu.memory_space<vmem>>, vector<128x32xf32>
    %cst_41 = arith.constant dense<0.000000e+00> : vector<8x32xf32>
    %104 = tpu.matmul %102, %103, %cst_41 {dimension_numbers = #tpu.dot_dimension_numbers<[1], [0], [0], [1], [0, 0, 1, 1], [], []>} : vector<8x128xf32>, vector<128x32xf32>, vector<8x32xf32> -> vector<8x32xf32>
    %c0_42 = arith.constant 0 : index
    %c0_43 = arith.constant 0 : index
    %105 = vector.load %arg15[%c0_42, %c0_43] : memref<1x32xf32, #tpu.memory_space<vmem>>, vector<1x32xf32>
    %106 = vector.broadcast %105 : vector<1x32xf32> to vector<8x32xf32>
    %107 = arith.addf %104, %106 : vector<8x32xf32>
    %108 = arith.addf %107, %95 : vector<8x32xf32>
    %c0_44 = arith.constant 0 : index
    %c0_45 = arith.constant 0 : index
    %109 = vector.load %arg16[%c0_44, %c0_45] : memref<1x32xf32, #tpu.memory_space<vmem>>, vector<1x32xf32>
    %c0_46 = arith.constant 0 : index
    %c0_47 = arith.constant 0 : index
    %110 = vector.load %arg17[%c0_46, %c0_47] : memref<1x32xf32, #tpu.memory_space<vmem>>, vector<1x32xf32>
    %cst_48 = arith.constant dense<0.000000e+00> : vector<8xf32>
    %111 = vector.multi_reduction <add>, %108, %cst_48 [1] : vector<8x32xf32> to vector<8xf32>
    %112 = vector.shape_cast %111 : vector<8xf32> to vector<8x1xf32>
    %cst_49 = arith.constant 3.200000e+01 : f32
    %113 = vector.broadcast %cst_49 : f32 to vector<8x1xf32>
    %114 = arith.divf %112, %113 : vector<8x1xf32>
    %115 = vector.broadcast %114 : vector<8x1xf32> to vector<8x32xf32>
    %116 = arith.subf %108, %115 : vector<8x32xf32>
    %117 = arith.mulf %116, %116 : vector<8x32xf32>
    %cst_50 = arith.constant dense<0.000000e+00> : vector<8xf32>
    %118 = vector.multi_reduction <add>, %117, %cst_50 [1] : vector<8x32xf32> to vector<8xf32>
    %119 = vector.shape_cast %118 : vector<8xf32> to vector<8x1xf32>
    %cst_51 = arith.constant 3.200000e+01 : f32
    %120 = vector.broadcast %cst_51 : f32 to vector<8x1xf32>
    %121 = arith.divf %119, %120 : vector<8x1xf32>
    %122 = vector.broadcast %114 : vector<8x1xf32> to vector<8x32xf32>
    %123 = arith.subf %108, %122 : vector<8x32xf32>
    %cst_52 = arith.constant 9.99999974E-6 : f32
    %124 = vector.broadcast %cst_52 : f32 to vector<8x1xf32>
    %125 = arith.addf %121, %124 : vector<8x1xf32>
    %126 = math.rsqrt %125 : vector<8x1xf32>
    %127 = vector.broadcast %126 : vector<8x1xf32> to vector<8x32xf32>
    %128 = arith.mulf %123, %127 : vector<8x32xf32>
    %129 = vector.broadcast %109 : vector<1x32xf32> to vector<8x32xf32>
    %130 = arith.mulf %128, %129 : vector<8x32xf32>
    %131 = vector.broadcast %110 : vector<1x32xf32> to vector<8x32xf32>
    %132 = arith.addf %130, %131 : vector<8x32xf32>
    %c0_53 = arith.constant 0 : index
    %c0_54 = arith.constant 0 : index
    %c0_55 = arith.constant 0 : index
    %133 = vector.load %arg18[%c0_53, %c0_54, %c0_55] : memref<1x8x32xf32, #tpu.memory_space<vmem>>, vector<1x8x32xf32>
    %134 = vector.shape_cast %133 : vector<1x8x32xf32> to vector<8x32xf32>
    %135 = vector.shape_cast %132 : vector<8x32xf32> to vector<1x8x32xf32>
    tpu.vector_store %arg18[%c0_53, %c0_54, %c0_55], %135 {strides = array<i32>} : memref<1x8x32xf32, #tpu.memory_space<vmem>>, vector<1x8x32xf32>,
    return
  }
  func.func @transform_0(%arg0: i32, %arg1: i32) -> (i32, i32, i32) {
    %c0_i32 = arith.constant 0 : i32
    %c0_i32_0 = arith.constant 0 : i32
    %c0_i32_1 = arith.constant 0 : i32
    return %arg0, %c0_i32, %c0_i32_0 : i32, i32, i32
  }
  func.func @transform_1(%arg0: i32, %arg1: i32) -> (i32, i32, i32) {
    %c0_i32 = arith.constant 0 : i32
    %c0_i32_0 = arith.constant 0 : i32
    return %arg0, %arg1, %c0_i32 : i32, i32, i32
  }
  func.func @transform_2(%arg0: i32, %arg1: i32) -> (i32, i32) {
    %c0_i32 = arith.constant 0 : i32
    %c0_i32_0 = arith.constant 0 : i32
    %c0_i32_1 = arith.constant 0 : i32
    return %c0_i32, %c0_i32_0 : i32, i32
  }
  func.func @transform_3(%arg0: i32, %arg1: i32) -> (i32, i32) {
    %c0_i32 = arith.constant 0 : i32
    %c0_i32_0 = arith.constant 0 : i32
    %c0_i32_1 = arith.constant 0 : i32
    return %c0_i32, %c0_i32_0 : i32, i32
  }
  func.func @transform_4(%arg0: i32, %arg1: i32) -> (i32, i32) {
    %c0_i32 = arith.constant 0 : i32
    %c0_i32_0 = arith.constant 0 : i32
    %c0_i32_1 = arith.constant 0 : i32
    return %c0_i32, %c0_i32_0 : i32, i32
  }
  func.func @transform_5(%arg0: i32, %arg1: i32) -> (i32, i32) {
    %c0_i32 = arith.constant 0 : i32
    %c0_i32_0 = arith.constant 0 : i32
    %c0_i32_1 = arith.constant 0 : i32
    return %c0_i32, %c0_i32_0 : i32, i32
  }
  func.func @transform_6(%arg0: i32, %arg1: i32) -> (i32, i32) {
    %c0_i32 = arith.constant 0 : i32
    %c0_i32_0 = arith.constant 0 : i32
    %c0_i32_1 = arith.constant 0 : i32
    return %c0_i32, %c0_i32_0 : i32, i32
  }
  func.func @transform_7(%arg0: i32, %arg1: i32) -> (i32, i32) {
    %c0_i32 = arith.constant 0 : i32
    %c0_i32_0 = arith.constant 0 : i32
    %c0_i32_1 = arith.constant 0 : i32
    return %c0_i32, %c0_i32_0 : i32, i32
  }
  func.func @transform_8(%arg0: i32, %arg1: i32) -> (i32, i32) {
    %c0_i32 = arith.constant 0 : i32
    %c0_i32_0 = arith.constant 0 : i32
    %c0_i32_1 = arith.constant 0 : i32
    return %c0_i32, %c0_i32_0 : i32, i32
  }
  func.func @transform_9(%arg0: i32, %arg1: i32) -> (i32, i32) {
    %c0_i32 = arith.constant 0 : i32
    %c0_i32_0 = arith.constant 0 : i32
    %c0_i32_1 = arith.constant 0 : i32
    return %c0_i32, %c0_i32_0 : i32, i32
  }
  func.func @transform_10(%arg0: i32, %arg1: i32) -> (i32, i32) {
    %c0_i32 = arith.constant 0 : i32
    %c0_i32_0 = arith.constant 0 : i32
    %c0_i32_1 = arith.constant 0 : i32
    return %c0_i32, %c0_i32_0 : i32, i32
  }
  func.func @transform_11(%arg0: i32, %arg1: i32) -> (i32, i32) {
    %c0_i32 = arith.constant 0 : i32
    %c0_i32_0 = arith.constant 0 : i32
    %c0_i32_1 = arith.constant 0 : i32
    return %c0_i32, %c0_i32_0 : i32, i32
  }
  func.func @transform_12(%arg0: i32, %arg1: i32) -> (i32, i32) {
    %c0_i32 = arith.constant 0 : i32
    %c0_i32_0 = arith.constant 0 : i32
    %c0_i32_1 = arith.constant 0 : i32
    return %c0_i32, %c0_i32_0 : i32, i32
  }
  func.func @transform_13(%arg0: i32, %arg1: i32) -> (i32, i32) {
    %c0_i32 = arith.constant 0 : i32
    %c0_i32_0 = arith.constant 0 : i32
    %c0_i32_1 = arith.constant 0 : i32
    return %c0_i32, %c0_i32_0 : i32, i32
  }
  func.func @transform_14(%arg0: i32, %arg1: i32) -> (i32, i32) {
    %c0_i32 = arith.constant 0 : i32
    %c0_i32_0 = arith.constant 0 : i32
    %c0_i32_1 = arith.constant 0 : i32
    return %c0_i32, %c0_i32_0 : i32, i32
  }
  func.func @transform_15(%arg0: i32, %arg1: i32) -> (i32, i32) {
    %c0_i32 = arith.constant 0 : i32
    %c0_i32_0 = arith.constant 0 : i32
    %c0_i32_1 = arith.constant 0 : i32
    return %c0_i32, %c0_i32_0 : i32, i32
  }
  func.func @transform_16(%arg0: i32, %arg1: i32) -> (i32, i32, i32) {
    %c0_i32 = arith.constant 0 : i32
    %c0_i32_0 = arith.constant 0 : i32
    return %arg0, %arg1, %c0_i32 : i32, i32, i32
  }
}

</mosaic_0001>

<llo_original>
// kernel: tpu_custom_call.1
$region0: #{tpu_custom_call.1}
  #allocation0 [shape = 'u32[]', space=smem, size = 0x4, offset = 0x4, fixed_abs, tag = 'smem constant byte address 0x4 - core index']
  #allocation1 [shape = 'u32[144,128]{1,0:T(1,128)}', space=vmem, size = 0x12000, scoped, tag = 'internal scratch']
  %s0 = inlined_call_operand.vmem [shape: f32[2,8,32], index: 0, kind: input, shape index: {}]
  %s1 = inlined_call_operand.vmem [shape: f32[2,8,32], index: 1, kind: input, shape index: {}]
  %s2 = inlined_call_operand.vmem [shape: f32[32,32], index: 2, kind: input, shape index: {}]
  %s3 = inlined_call_operand.vmem [shape: f32[1,32], index: 3, kind: input, shape index: {}]
  %s4 = inlined_call_operand.vmem [shape: f32[32,64], index: 4, kind: input, shape index: {}]
  %s5 = inlined_call_operand.vmem [shape: f32[1,64], index: 5, kind: input, shape index: {}]
  %s6 = inlined_call_operand.vmem [shape: f32[32,32], index: 6, kind: input, shape index: {}]
  %s7 = inlined_call_operand.vmem [shape: f32[1,32], index: 7, kind: input, shape index: {}]
  %s8 = inlined_call_operand.vmem [shape: f32[1,32], index: 8, kind: input, shape index: {}]
  %s9 = inlined_call_operand.vmem [shape: f32[1,32], index: 9, kind: input, shape index: {}]
  %s10 = inlined_call_operand.vmem [shape: f32[32,128], index: 10, kind: input, shape index: {}]
  %s11 = inlined_call_operand.vmem [shape: f32[1,128], index: 11, kind: input, shape index: {}]
  %s12 = inlined_call_operand.vmem [shape: f32[128,32], index: 12, kind: input, shape index: {}]
  %s13 = inlined_call_operand.vmem [shape: f32[1,32], index: 13, kind: input, shape index: {}]
  %s14 = inlined_call_operand.vmem [shape: f32[1,32], index: 14, kind: input, shape index: {}]
  %s15 = inlined_call_operand.vmem [shape: f32[1,32], index: 15, kind: input, shape index: {}]
  %s16 = inlined_call_operand.hbm [shape: f32[2,8,32], index: 16, kind: output, shape index: {}]
  %s17 = sld [smem:[#allocation0]]
  $region97: #{tpu_custom_call.1} parent=0
    _
  %s19 = ssub.s32 1, %s17
  %s20 = scalar_select 0, %s19, %s17
  $region1: #{tpu_custom_call.1} parent=0
    #allocation2 [shape = 'u8[8192]{0}', space=vmem, size = 0x2000, scoped, tag = 'output window, operand 0']
    #allocation3 [shape = 's32[2]{0}', space=sflag, size = 0x8, scoped, tag = 'scoped memory for tpu_custom_call.1']
    %21 = vsyncpa [#allocation3], 0
    %s22 = scalar_lea.sflag [#allocation3], 1
    %23 = vsyncpa %s22, 0
    loop: start=0, step=1, limit=4
    $region2: #{tpu_custom_call.1} parent=1 // loop_pre_header
      _
    $region3: #{tpu_custom_call.1} parent=1 // loop_header
      %s25 = sphi 0, %s29
      %p26 = scmp.ge.s32.totalorder %s25, 4
      %s32 = sphi 0, %s44
      %s33 = sphi 0, %s40
      %s34 = sphi 0, %s32
      %s35 = sphi 0, %s33
      %s36 = sphi 0, %s34
      %s37 = sphi 0, %s35
      %s47 = sphi 0, %s49
      %s50 = sphi 0, %s47
      %s51 = sphi 0, %s50
      %s67 = sphi 0, %s51
      %s75 = sphi 0, %s77
      %s78 = sphi 0, %s75
      %s79 = sphi 0, %s78
      %s95 = sphi 0, %s79
      %s99 = sphi 0, %s99
      %s101 = sphi 0, %s99
      %s102 = sphi 0, %s101
      %s116 = sphi 0, %s102
      %s120 = sphi 0, %s120
      %s122 = sphi 0, %s120
      %s123 = sphi 0, %s122
      %s137 = sphi 0, %s123
      %s141 = sphi 0, %s141
      %s143 = sphi 0, %s141
      %s144 = sphi 0, %s143
      %s158 = sphi 0, %s144
      %s162 = sphi 0, %s162
      %s164 = sphi 0, %s162
      %s165 = sphi 0, %s164
      %s179 = sphi 0, %s165
      %s183 = sphi 0, %s183
      %s185 = sphi 0, %s183
      %s186 = sphi 0, %s185
      %s200 = sphi 0, %s186
      %s204 = sphi 0, %s204
      %s206 = sphi 0, %s204
      %s207 = sphi 0, %s206
      %s221 = sphi 0, %s207
      %s225 = sphi 0, %s225
      %s227 = sphi 0, %s225
      %s228 = sphi 0, %s227
      %s242 = sphi 0, %s228
      %s246 = sphi 0, %s246
      %s248 = sphi 0, %s246
      %s249 = sphi 0, %s248
      %s263 = sphi 0, %s249
      %s267 = sphi 0, %s267
      %s269 = sphi 0, %s267
      %s270 = sphi 0, %s269
      %s284 = sphi 0, %s270
      %s288 = sphi 0, %s288
      %s290 = sphi 0, %s288
      %s291 = sphi 0, %s290
      %s305 = sphi 0, %s291
      %s309 = sphi 0, %s309
      %s311 = sphi 0, %s309
      %s312 = sphi 0, %s311
      %s326 = sphi 0, %s312
      %s330 = sphi 0, %s330
      %s332 = sphi 0, %s330
      %s333 = sphi 0, %s332
      %s347 = sphi 0, %s333
      %s351 = sphi 0, %s351
      %s353 = sphi 0, %s351
      %s354 = sphi 0, %s353
      %s368 = sphi 0, %s354
      %s372 = sphi 0, %s372
      %s374 = sphi 0, %s372
      %s375 = sphi 0, %s374
      %s389 = sphi 0, %s375
      %s397 = sphi 0, %s399
      %s400 = sphi 0, %s397
      %s401 = sphi 0, %s400
      %s417 = sphi 0, %s401
    $region4: #{tpu_custom_call.1} parent=1 // loop_header_branch
      %28 = sbr.rel (%p26) target = $region8
    $region5: #{tpu_custom_call.1} parent=1 // loop_body
      %s30 = ssub.s32 %s25, 1
      %s31 = ssub.s32 %s25, 2
      %s38 = sadd.s32 1, %s33
      %p39 = scmp.ge.s32.totalorder %s38, 1
      %s40 = scalar_select %p39, 0, %s38
      %s41 = sadd.s32 1, %s32
      %s42 = scalar_select %p39, %s41, %s32
      %p43 = scmp.ge.s32.totalorder %s42, 2
      %s44 = scalar_select %p43, 0, %s42
      %s45 = ssub.s32 %s32, %s44
      %p46 = scmp.eq.s32.totalorder %s45, 0
      %s48 = sadd.s32 %s47, 1
      %s49 = scalar_select %p46, %s47, %s48
      %p52 = pneg %p46
      %p53 = scmp.eq.s32.totalorder %s25, 1
      %p54 = por %p52, %p53
      %p55 = scmp.ne.s32.totalorder %s47, %s50
      %p56 = scmp.eq.s32.totalorder %s25, 0
      %p57 = por %p55, %p56
      %p58 = scmp.ne.s32.totalorder %s47, %s50
      %p59 = scmp.eq.s32.totalorder %s30, 1
      %p60 = por %p58, %p59
      %p61 = scmp.ne.s32.totalorder %s50, %s51
      %p62 = scmp.eq.s32.totalorder %s30, 0
      %p63 = por %p61, %p62
      %p64 = scmp.ne.s32.totalorder %s50, %s51
      %p65 = scmp.eq.s32.totalorder %s31, 1
      %p66 = por %p64, %p65
      %p68 = scmp.ne.s32.totalorder %s51, %s67
      %p69 = scmp.eq.s32.totalorder %s31, 0
      %p70 = por %p68, %p69
      %s71 = ssub.s32 %s32, %s44
      %s72 = ssub.s32 %s33, %s40
      %s73 = sor.u32 %s71, %s72
      %p74 = scmp.eq.s32.totalorder %s73, 0
      %s76 = sadd.s32 %s75, 1
      %s77 = scalar_select %p74, %s75, %s76
      %p80 = pneg %p74
      %p81 = scmp.eq.s32.totalorder %s25, 1
      %p82 = por %p80, %p81
      %p83 = scmp.ne.s32.totalorder %s75, %s78
      %p84 = scmp.eq.s32.totalorder %s25, 0
      %p85 = por %p83, %p84
      %p86 = scmp.ne.s32.totalorder %s75, %s78
      %p87 = scmp.eq.s32.totalorder %s30, 1
      %p88 = por %p86, %p87
      %p89 = scmp.ne.s32.totalorder %s78, %s79
      %p90 = scmp.eq.s32.totalorder %s30, 0
      %p91 = por %p89, %p90
      %p92 = scmp.ne.s32.totalorder %s78, %s79
      %p93 = scmp.eq.s32.totalorder %s31, 1
      %p94 = por %p92, %p93
      %p96 = scmp.ne.s32.totalorder %s79, %s95
      %p97 = scmp.eq.s32.totalorder %s31, 0
      %p98 = por %p96, %p97
      %s100 = sadd.s32 %s99, 1
      %p103 = scmp.eq.s32.totalorder %s25, 1
      %p104 = scmp.ne.s32.totalorder %s99, %s101
      %p105 = scmp.eq.s32.totalorder %s25, 0
      %p106 = por %p104, %p105
      %p107 = scmp.ne.s32.totalorder %s99, %s101
      %p108 = scmp.eq.s32.totalorder %s30, 1
      %p109 = por %p107, %p108
      %p110 = scmp.ne.s32.totalorder %s101, %s102
      %p111 = scmp.eq.s32.totalorder %s30, 0
      %p112 = por %p110, %p111
      %p113 = scmp.ne.s32.totalorder %s101, %s102
      %p114 = scmp.eq.s32.totalorder %s31, 1
      %p115 = por %p113, %p114
      %p117 = scmp.ne.s32.totalorder %s102, %s116
      %p118 = scmp.eq.s32.totalorder %s31, 0
      %p119 = por %p117, %p118
      %s121 = sadd.s32 %s120, 1
      %p124 = scmp.eq.s32.totalorder %s25, 1
      %p125 = scmp.ne.s32.totalorder %s120, %s122
      %p126 = scmp.eq.s32.totalorder %s25, 0
      %p127 = por %p125, %p126
      %p128 = scmp.ne.s32.totalorder %s120, %s122
      %p129 = scmp.eq.s32.totalorder %s30, 1
      %p130 = por %p128, %p129
      %p131 = scmp.ne.s32.totalorder %s122, %s123
      %p132 = scmp.eq.s32.totalorder %s30, 0
      %p133 = por %p131, %p132
      %p134 = scmp.ne.s32.totalorder %s122, %s123
      %p135 = scmp.eq.s32.totalorder %s31, 1
      %p136 = por %p134, %p135
      %p138 = scmp.ne.s32.totalorder %s123, %s137
      %p139 = scmp.eq.s32.totalorder %s31, 0
      %p140 = por %p138, %p139
      %s142 = sadd.s32 %s141, 1
      %p145 = scmp.eq.s32.totalorder %s25, 1
      %p146 = scmp.ne.s32.totalorder %s141, %s143
      %p147 = scmp.eq.s32.totalorder %s25, 0
      %p148 = por %p146, %p147
      %p149 = scmp.ne.s32.totalorder %s141, %s143
      %p150 = scmp.eq.s32.totalorder %s30, 1
      %p151 = por %p149, %p150
      %p152 = scmp.ne.s32.totalorder %s143, %s144
      %p153 = scmp.eq.s32.totalorder %s30, 0
      %p154 = por %p152, %p153
      %p155 = scmp.ne.s32.totalorder %s143, %s144
      %p156 = scmp.eq.s32.totalorder %s31, 1
      %p157 = por %p155, %p156
      %p159 = scmp.ne.s32.totalorder %s144, %s158
      %p160 = scmp.eq.s32.totalorder %s31, 0
      %p161 = por %p159, %p160
      %s163 = sadd.s32 %s162, 1
      %p166 = scmp.eq.s32.totalorder %s25, 1
      %p167 = scmp.ne.s32.totalorder %s162, %s164
      %p168 = scmp.eq.s32.totalorder %s25, 0
      %p169 = por %p167, %p168
      %p170 = scmp.ne.s32.totalorder %s162, %s164
      %p171 = scmp.eq.s32.totalorder %s30, 1
      %p172 = por %p170, %p171
      %p173 = scmp.ne.s32.totalorder %s164, %s165
      %p174 = scmp.eq.s32.totalorder %s30, 0
      %p175 = por %p173, %p174
      %p176 = scmp.ne.s32.totalorder %s164, %s165
      %p177 = scmp.eq.s32.totalorder %s31, 1
      %p178 = por %p176, %p177
      %p180 = scmp.ne.s32.totalorder %s165, %s179
      %p181 = scmp.eq.s32.totalorder %s31, 0
      %p182 = por %p180, %p181
      %s184 = sadd.s32 %s183, 1
      %p187 = scmp.eq.s32.totalorder %s25, 1
      %p188 = scmp.ne.s32.totalorder %s183, %s185
      %p189 = scmp.eq.s32.totalorder %s25, 0
      %p190 = por %p188, %p189
      %p191 = scmp.ne.s32.totalorder %s183, %s185
      %p192 = scmp.eq.s32.totalorder %s30, 1
      %p193 = por %p191, %p192
      %p194 = scmp.ne.s32.totalorder %s185, %s186
      %p195 = scmp.eq.s32.totalorder %s30, 0
      %p196 = por %p194, %p195
      %p197 = scmp.ne.s32.totalorder %s185, %s186
      %p198 = scmp.eq.s32.totalorder %s31, 1
      %p199 = por %p197, %p198
      %p201 = scmp.ne.s32.totalorder %s186, %s200
      %p202 = scmp.eq.s32.totalorder %s31, 0
      %p203 = por %p201, %p202
      %s205 = sadd.s32 %s204, 1
      %p208 = scmp.eq.s32.totalorder %s25, 1
      %p209 = scmp.ne.s32.totalorder %s204, %s206
      %p210 = scmp.eq.s32.totalorder %s25, 0
      %p211 = por %p209, %p210
      %p212 = scmp.ne.s32.totalorder %s204, %s206
      %p213 = scmp.eq.s32.totalorder %s30, 1
      %p214 = por %p212, %p213
      %p215 = scmp.ne.s32.totalorder %s206, %s207
      %p216 = scmp.eq.s32.totalorder %s30, 0
      %p217 = por %p215, %p216
      %p218 = scmp.ne.s32.totalorder %s206, %s207
      %p219 = scmp.eq.s32.totalorder %s31, 1
      %p220 = por %p218, %p219
      %p222 = scmp.ne.s32.totalorder %s207, %s221
      %p223 = scmp.eq.s32.totalorder %s31, 0
      %p224 = por %p222, %p223
      %s226 = sadd.s32 %s225, 1
      %p229 = scmp.eq.s32.totalorder %s25, 1
      %p230 = scmp.ne.s32.totalorder %s225, %s227
      %p231 = scmp.eq.s32.totalorder %s25, 0
      %p232 = por %p230, %p231
      %p233 = scmp.ne.s32.totalorder %s225, %s227
      %p234 = scmp.eq.s32.totalorder %s30, 1
      %p235 = por %p233, %p234
      %p236 = scmp.ne.s32.totalorder %s227, %s228
      %p237 = scmp.eq.s32.totalorder %s30, 0
      %p238 = por %p236, %p237
      %p239 = scmp.ne.s32.totalorder %s227, %s228
      %p240 = scmp.eq.s32.totalorder %s31, 1
      %p241 = por %p239, %p240
      %p243 = scmp.ne.s32.totalorder %s228, %s242
      %p244 = scmp.eq.s32.totalorder %s31, 0
      %p245 = por %p243, %p244
      %s247 = sadd.s32 %s246, 1
      %p250 = scmp.eq.s32.totalorder %s25, 1
      %p251 = scmp.ne.s32.totalorder %s246, %s248
      %p252 = scmp.eq.s32.totalorder %s25, 0
      %p253 = por %p251, %p252
      %p254 = scmp.ne.s32.totalorder %s246, %s248
      %p255 = scmp.eq.s32.totalorder %s30, 1
      %p256 = por %p254, %p255
      %p257 = scmp.ne.s32.totalorder %s248, %s249
      %p258 = scmp.eq.s32.totalorder %s30, 0
      %p259 = por %p257, %p258
      %p260 = scmp.ne.s32.totalorder %s248, %s249
      %p261 = scmp.eq.s32.totalorder %s31, 1
      %p262 = por %p260, %p261
      %p264 = scmp.ne.s32.totalorder %s249, %s263
      %p265 = scmp.eq.s32.totalorder %s31, 0
      %p266 = por %p264, %p265
      %s268 = sadd.s32 %s267, 1
      %p271 = scmp.eq.s32.totalorder %s25, 1
      %p272 = scmp.ne.s32.totalorder %s267, %s269
      %p273 = scmp.eq.s32.totalorder %s25, 0
      %p274 = por %p272, %p273
      %p275 = scmp.ne.s32.totalorder %s267, %s269
      %p276 = scmp.eq.s32.totalorder %s30, 1
      %p277 = por %p275, %p276
      %p278 = scmp.ne.s32.totalorder %s269, %s270
      %p279 = scmp.eq.s32.totalorder %s30, 0
      %p280 = por %p278, %p279
      %p281 = scmp.ne.s32.totalorder %s269, %s270
      %p282 = scmp.eq.s32.totalorder %s31, 1
      %p283 = por %p281, %p282
      %p285 = scmp.ne.s32.totalorder %s270, %s284
      %p286 = scmp.eq.s32.totalorder %s31, 0
      %p287 = por %p285, %p286
      %s289 = sadd.s32 %s288, 1
      %p292 = scmp.eq.s32.totalorder %s25, 1
      %p293 = scmp.ne.s32.totalorder %s288, %s290
      %p294 = scmp.eq.s32.totalorder %s25, 0
      %p295 = por %p293, %p294
      %p296 = scmp.ne.s32.totalorder %s288, %s290
      %p297 = scmp.eq.s32.totalorder %s30, 1
      %p298 = por %p296, %p297
      %p299 = scmp.ne.s32.totalorder %s290, %s291
      %p300 = scmp.eq.s32.totalorder %s30, 0
      %p301 = por %p299, %p300
      %p302 = scmp.ne.s32.totalorder %s290, %s291
      %p303 = scmp.eq.s32.totalorder %s31, 1
      %p304 = por %p302, %p303
      %p306 = scmp.ne.s32.totalorder %s291, %s305
      %p307 = scmp.eq.s32.totalorder %s31, 0
      %p308 = por %p306, %p307
      %s310 = sadd.s32 %s309, 1
      %p313 = scmp.eq.s32.totalorder %s25, 1
      %p314 = scmp.ne.s32.totalorder %s309, %s311
      %p315 = scmp.eq.s32.totalorder %s25, 0
      %p316 = por %p314, %p315
      %p317 = scmp.ne.s32.totalorder %s309, %s311
      %p318 = scmp.eq.s32.totalorder %s30, 1
      %p319 = por %p317, %p318
      %p320 = scmp.ne.s32.totalorder %s311, %s312
      %p321 = scmp.eq.s32.totalorder %s30, 0
      %p322 = por %p320, %p321
      %p323 = scmp.ne.s32.totalorder %s311, %s312
      %p324 = scmp.eq.s32.totalorder %s31, 1
      %p325 = por %p323, %p324
      %p327 = scmp.ne.s32.totalorder %s312, %s326
      %p328 = scmp.eq.s32.totalorder %s31, 0
      %p329 = por %p327, %p328
      %s331 = sadd.s32 %s330, 1
      %p334 = scmp.eq.s32.totalorder %s25, 1
      %p335 = scmp.ne.s32.totalorder %s330, %s332
      %p336 = scmp.eq.s32.totalorder %s25, 0
      %p337 = por %p335, %p336
      %p338 = scmp.ne.s32.totalorder %s330, %s332
      %p339 = scmp.eq.s32.totalorder %s30, 1
      %p340 = por %p338, %p339
      %p341 = scmp.ne.s32.totalorder %s332, %s333
      %p342 = scmp.eq.s32.totalorder %s30, 0
      %p343 = por %p341, %p342
      %p344 = scmp.ne.s32.totalorder %s332, %s333
      %p345 = scmp.eq.s32.totalorder %s31, 1
      %p346 = por %p344, %p345
      %p348 = scmp.ne.s32.totalorder %s333, %s347
      %p349 = scmp.eq.s32.totalorder %s31, 0
      %p350 = por %p348, %p349
      %s352 = sadd.s32 %s351, 1
      %p355 = scmp.eq.s32.totalorder %s25, 1
      %p356 = scmp.ne.s32.totalorder %s351, %s353
      %p357 = scmp.eq.s32.totalorder %s25, 0
      %p358 = por %p356, %p357
      %p359 = scmp.ne.s32.totalorder %s351, %s353
      %p360 = scmp.eq.s32.totalorder %s30, 1
      %p361 = por %p359, %p360
      %p362 = scmp.ne.s32.totalorder %s353, %s354
      %p363 = scmp.eq.s32.totalorder %s30, 0
      %p364 = por %p362, %p363
      %p365 = scmp.ne.s32.totalorder %s353, %s354
      %p366 = scmp.eq.s32.totalorder %s31, 1
      %p367 = por %p365, %p366
      %p369 = scmp.ne.s32.totalorder %s354, %s368
      %p370 = scmp.eq.s32.totalorder %s31, 0
      %p371 = por %p369, %p370
      %s373 = sadd.s32 %s372, 1
      %p376 = scmp.eq.s32.totalorder %s25, 1
      %p377 = scmp.ne.s32.totalorder %s372, %s374
      %p378 = scmp.eq.s32.totalorder %s25, 0
      %p379 = por %p377, %p378
      %p380 = scmp.ne.s32.totalorder %s372, %s374
      %p381 = scmp.eq.s32.totalorder %s30, 1
      %p382 = por %p380, %p381
      %p383 = scmp.ne.s32.totalorder %s374, %s375
      %p384 = scmp.eq.s32.totalorder %s30, 0
      %p385 = por %p383, %p384
      %p386 = scmp.ne.s32.totalorder %s374, %s375
      %p387 = scmp.eq.s32.totalorder %s31, 1
      %p388 = por %p386, %p387
      %p390 = scmp.ne.s32.totalorder %s375, %s389
      %p391 = scmp.eq.s32.totalorder %s31, 0
      %p392 = por %p390, %p391
      %s393 = ssub.s32 %s32, %s44
      %s394 = ssub.s32 %s33, %s40
      %s395 = sor.u32 %s393, %s394
      %p396 = scmp.eq.s32.totalorder %s395, 0
      %s398 = sadd.s32 %s397, 1
      %s399 = scalar_select %p396, %s397, %s398
      %p402 = pneg %p396
      %p403 = scmp.eq.s32.totalorder %s25, 1
      %p404 = por %p402, %p403
      %p405 = scmp.ne.s32.totalorder %s397, %s400
      %p406 = scmp.eq.s32.totalorder %s25, 0
      %p407 = por %p405, %p406
      %p408 = scmp.ne.s32.totalorder %s397, %s400
      %p409 = scmp.eq.s32.totalorder %s30, 1
      %p410 = por %p408, %p409
      %p411 = scmp.ne.s32.totalorder %s400, %s401
      %p412 = scmp.eq.s32.totalorder %s30, 0
      %p413 = por %p411, %p412
      %p414 = scmp.ne.s32.totalorder %s400, %s401
      %p415 = scmp.eq.s32.totalorder %s31, 1
      %p416 = por %p414, %p415
      %p418 = scmp.ne.s32.totalorder %s401, %s417
      %p419 = scmp.eq.s32.totalorder %s31, 0
      %p420 = por %p418, %p419
      %p421 = scmp.le.s32.totalorder 1, %s25
      %p422 = scmp.lt.s32.totalorder %s25, 3
      %p423 = pnand %p421, %p422
      %p424 = pneg %p423
      // Predicated region
      $region9: #{tpu_custom_call.1} parent=5 // pred_check
        _
      $region10: #{tpu_custom_call.1} parent=5 // pred_check_branch
        %426 = sbr.rel (%p423) target = $region12
      $region11: #{tpu_custom_call.1} parent=5 // pred_region
        %s427 = ssub.s32 %s25, 1
        // Predicated region
        $region13: #{tpu_custom_call.1} parent=11 // pred_check
          %p428 = pneg %p112
        $region14: #{tpu_custom_call.1} parent=11 // pred_check_branch
          %430 = sbr.rel (%p428) target = $region16
        $region15: #{tpu_custom_call.1} parent=11 // pred_region
          _
        $region16: #{tpu_custom_call.1} parent=11 // pred_fallthru
          _
        // Predicated region
        $region17: #{tpu_custom_call.1} parent=11 // pred_check
          %p431 = pneg %p133
        $region18: #{tpu_custom_call.1} parent=11 // pred_check_branch
          %433 = sbr.rel (%p431) target = $region20
        $region19: #{tpu_custom_call.1} parent=11 // pred_region
          _
        $region20: #{tpu_custom_call.1} parent=11 // pred_fallthru
          _
        // Predicated region
        $region21: #{tpu_custom_call.1} parent=11 // pred_check
          %p434 = pneg %p154
        $region22: #{tpu_custom_call.1} parent=11 // pred_check_branch
          %436 = sbr.rel (%p434) target = $region24
        $region23: #{tpu_custom_call.1} parent=11 // pred_region
          _
        $region24: #{tpu_custom_call.1} parent=11 // pred_fallthru
          _
        // Predicated region
        $region25: #{tpu_custom_call.1} parent=11 // pred_check
          %p437 = pneg %p175
        $region26: #{tpu_custom_call.1} parent=11 // pred_check_branch
          %439 = sbr.rel (%p437) target = $region28
        $region27: #{tpu_custom_call.1} parent=11 // pred_region
          _
        $region28: #{tpu_custom_call.1} parent=11 // pred_fallthru
          _
        // Predicated region
        $region29: #{tpu_custom_call.1} parent=11 // pred_check
          %p440 = pneg %p196
        $region30: #{tpu_custom_call.1} parent=11 // pred_check_branch
          %442 = sbr.rel (%p440) target = $region32
        $region31: #{tpu_custom_call.1} parent=11 // pred_region
          _
        $region32: #{tpu_custom_call.1} parent=11 // pred_fallthru
          _
        // Predicated region
        $region33: #{tpu_custom_call.1} parent=11 // pred_check
          %p443 = pneg %p217
        $region34: #{tpu_custom_call.1} parent=11 // pred_check_branch
          %445 = sbr.rel (%p443) target = $region36
        $region35: #{tpu_custom_call.1} parent=11 // pred_region
          _
        $region36: #{tpu_custom_call.1} parent=11 // pred_fallthru
          _
        // Predicated region
        $region37: #{tpu_custom_call.1} parent=11 // pred_check
          %p446 = pneg %p238
        $region38: #{tpu_custom_call.1} parent=11 // pred_check_branch
          %448 = sbr.rel (%p446) target = $region40
        $region39: #{tpu_custom_call.1} parent=11 // pred_region
          _
        $region40: #{tpu_custom_call.1} parent=11 // pred_fallthru
          _
        // Predicated region
        $region41: #{tpu_custom_call.1} parent=11 // pred_check
          %p449 = pneg %p259
        $region42: #{tpu_custom_call.1} parent=11 // pred_check_branch
          %451 = sbr.rel (%p449) target = $region44
        $region43: #{tpu_custom_call.1} parent=11 // pred_region
          _
        $region44: #{tpu_custom_call.1} parent=11 // pred_fallthru
          _
        // Predicated region
        $region45: #{tpu_custom_call.1} parent=11 // pred_check
          %p452 = pneg %p280
        $region46: #{tpu_custom_call.1} parent=11 // pred_check_branch
          %454 = sbr.rel (%p452) target = $region48
        $region47: #{tpu_custom_call.1} parent=11 // pred_region
          _
        $region48: #{tpu_custom_call.1} parent=11 // pred_fallthru
          _
        // Predicated region
        $region49: #{tpu_custom_call.1} parent=11 // pred_check
          %p455 = pneg %p301
        $region50: #{tpu_custom_call.1} parent=11 // pred_check_branch
          %457 = sbr.rel (%p455) target = $region52
        $region51: #{tpu_custom_call.1} parent=11 // pred_region
          _
        $region52: #{tpu_custom_call.1} parent=11 // pred_fallthru
          _
        // Predicated region
        $region53: #{tpu_custom_call.1} parent=11 // pred_check
          %p458 = pneg %p322
        $region54: #{tpu_custom_call.1} parent=11 // pred_check_branch
          %460 = sbr.rel (%p458) target = $region56
        $region55: #{tpu_custom_call.1} parent=11 // pred_region
          _
        $region56: #{tpu_custom_call.1} parent=11 // pred_fallthru
          _
        // Predicated region
        $region57: #{tpu_custom_call.1} parent=11 // pred_check
          %p461 = pneg %p343
        $region58: #{tpu_custom_call.1} parent=11 // pred_check_branch
          %463 = sbr.rel (%p461) target = $region60
        $region59: #{tpu_custom_call.1} parent=11 // pred_region
          _
        $region60: #{tpu_custom_call.1} parent=11 // pred_fallthru
          _
        // Predicated region
        $region61: #{tpu_custom_call.1} parent=11 // pred_check
          %p464 = pneg %p364
        $region62: #{tpu_custom_call.1} parent=11 // pred_check_branch
          %466 = sbr.rel (%p464) target = $region64
        $region63: #{tpu_custom_call.1} parent=11 // pred_region
          _
        $region64: #{tpu_custom_call.1} parent=11 // pred_fallthru
          _
        // Predicated region
        $region65: #{tpu_custom_call.1} parent=11 // pred_check
          %p467 = pneg %p385
        $region66: #{tpu_custom_call.1} parent=11 // pred_check_branch
          %469 = sbr.rel (%p467) target = $region68
        $region67: #{tpu_custom_call.1} parent=11 // pred_region
          _
        $region68: #{tpu_custom_call.1} parent=11 // pred_fallthru
          _
      $region12: #{tpu_custom_call.1} parent=5 // pred_fallthru
        _
      %p470 = scmp.lt.s32.totalorder %s25, 2
      // Predicated region
      $region69: #{tpu_custom_call.1} parent=5 // pred_check
        %p471 = pneg %p470
      $region70: #{tpu_custom_call.1} parent=5 // pred_check_branch
        %473 = sbr.rel (%p471) target = $region72
      $region71: #{tpu_custom_call.1} parent=5 // pred_region
        // Predicated region
        $region73: #{tpu_custom_call.1} parent=71 // pred_check
          %p474 = pneg %p57
        $region74: #{tpu_custom_call.1} parent=71 // pred_check_branch
          %476 = sbr.rel (%p474) target = $region76
        $region75: #{tpu_custom_call.1} parent=71 // pred_region
          %p477 = scmp.lt.s32.totalorder %s32, 1
          %s478 = scalar_select %p477, %s32, 1
          %s479 = smul.addr %s478, 8
          %s480 = scalar_lea.vmem %s0, %s479
        $region76: #{tpu_custom_call.1} parent=71 // pred_fallthru
          _
        // Predicated region
        $region77: #{tpu_custom_call.1} parent=71 // pred_check
          %p481 = pneg %p85
        $region78: #{tpu_custom_call.1} parent=71 // pred_check_branch
          %483 = sbr.rel (%p481) target = $region80
        $region79: #{tpu_custom_call.1} parent=71 // pred_region
          %p484 = scmp.lt.s32.totalorder %s32, 1
          %s485 = scalar_select %p484, %s32, 1
          %p486 = scmp.lt.s32.totalorder %s33, 0
          %s487 = scalar_select %p486, %s33, 0
          %s488 = sadd.s32 %s487, %s485
          %s489 = smul.addr %s488, 8
          %s490 = scalar_lea.vmem %s1, %s489
        $region80: #{tpu_custom_call.1} parent=71 // pred_fallthru
          _
      $region72: #{tpu_custom_call.1} parent=5 // pred_fallthru
        _
      %p491 = scmp.le.s32.totalorder 1, %s25
      %p492 = scmp.lt.s32.totalorder %s25, 3
      %p493 = pnand %p491, %p492
      %p494 = pneg %p493
      // Predicated region
      $region81: #{tpu_custom_call.1} parent=5 // pred_check
        _
      $region82: #{tpu_custom_call.1} parent=5 // pred_check_branch
        %496 = sbr.rel (%p493) target = $region84
      $region83: #{tpu_custom_call.1} parent=5 // pred_region
        %s497 = ssub.s32 %s25, 1
        %p498 = scmp.lt.s32.totalorder %s34, 1
        %s499 = scalar_select %p498, %s34, 1
        %s500 = smul.addr %s499, 8
        %s501 = scalar_lea.vmem %s0, %s500
        %p502 = pneg %p63
        %p503 = pneg %p60
        %p504 = scmp.lt.s32.totalorder %s34, 1
        %s505 = scalar_select %p504, %s34, 1
        %p506 = scmp.lt.s32.totalorder %s35, 0
        %s507 = scalar_select %p506, %s35, 0
        %s508 = sadd.s32 %s507, %s505
        %s509 = smul.addr %s508, 8
        %s510 = scalar_lea.vmem %s1, %s509
        %p511 = pneg %p91
        %p512 = pneg %p88
        %p513 = pneg %p112
        %p514 = pneg %p109
        %p515 = pneg %p133
        %p516 = pneg %p130
        %p517 = pneg %p154
        %p518 = pneg %p151
        %p519 = pneg %p175
        %p520 = pneg %p172
        %p521 = pneg %p196
        %p522 = pneg %p193
        %p523 = pneg %p217
        %p524 = pneg %p214
        %p525 = pneg %p238
        %p526 = pneg %p235
        %p527 = pneg %p259
        %p528 = pneg %p256
        %p529 = pneg %p280
        %p530 = pneg %p277
        %p531 = pneg %p301
        %p532 = pneg %p298
        %p533 = pneg %p322
        %p534 = pneg %p319
        %p535 = pneg %p343
        %p536 = pneg %p340
        %p537 = pneg %p364
        %p538 = pneg %p361
        %p539 = pneg %p385
        %p540 = pneg %p382
        %p541 = pneg %p413
        %p542 = pneg %p410
        %s543 = sand.u32 %s400, 1
        %s544 = scalar_lea.sflag [#allocation3], %s543
        %s545 = sand.u32 %s400, 1
        %s546 = smul.addr %s545, 8
        %s547 = scalar_lea.vmem [#allocation2], %s546
        %p548 = scmp.lt.s32.totalorder %s34, 1
        %s549 = scalar_select %p548, %s34, 1
        %s550 = smul.addr %s549, 8
        %s551 = scalar_lea.vmem %s0, %s550
        %p552 = scmp.lt.s32.totalorder %s34, 1
        %s553 = scalar_select %p552, %s34, 1
        %p554 = scmp.lt.s32.totalorder %s35, 0
        %s555 = scalar_select %p554, %s35, 0
        %s556 = sadd.s32 %s555, %s553
        %s557 = smul.addr %s556, 8
        %s558 = scalar_lea.vmem %s1, %s557
        %v559 = vld [vmem:[%s551] sm:$0xff]
        %v560 = vld [vmem:[%s558] sm:$0xff]
        %v561 = vld [vmem:[%s2] sm:$0xff]
        %v562 = vld [vmem:[%s2 + $0x8] sm:$0xff]
        %v563 = vld [vmem:[%s2 + $0x10] sm:$0xff]
        %v564 = vld [vmem:[%s2 + $0x18] sm:$0xff]
        %v565 = vld [vmem:[%s3] sm:$0x1]
        %v567 = vlaneseq
        %v568 = vshrl.u32 %v567, 7
        %v569 = vsub.s32 0, %v568
        %v570 = vrot.slane %v565, %v569
        %vm572 = vcmask 261120
        %v574 = vsel %vm572, %v560, 0
        %576 = vmatprep.subr.mxu0 0.0
        %577 = vmatpush1.msra.mxu0 %v561
        %578 = vmatprep.subr.mxu0 0.0
        %579 = vmatpush1.msra.mxu0 %v562
        %580 = vmatprep.subr.mxu0 0.0
        %581 = vmatpush1.msra.mxu0 %v563
        %582 = vmatprep.subr.mxu0 0.0
        %583 = vmatpush1.msra.mxu0 %v564
        %584 = vmatprep.subr.mxu0 0.0
        %585 = vmatpush1.msra.mxu0 0.0
        %586 = vmatprep.subr.mxu0 0.0
        %587 = vmatpush1.msra.mxu0 0.0
        %588 = vmatprep.subr.mxu0 0.0
        %589 = vmatpush1.msra.mxu0 0.0
        %590 = vmatprep.subr.mxu0 0.0
        %591 = vmatpush1.msra.mxu0 0.0
        %592 = vmatprep.subr.mxu0 0.0
        %593 = vmatpush1.msra.mxu0 0.0
        %594 = vmatprep.subr.mxu0 0.0
        %595 = vmatpush1.msra.mxu0 0.0
        %596 = vmatprep.subr.mxu0 0.0
        %597 = vmatpush1.msra.mxu0 0.0
        %598 = vmatprep.subr.mxu0 0.0
        %599 = vmatpush1.msra.mxu0 0.0
        %600 = vmatprep.subr.mxu0 0.0
        %601 = vmatpush1.msra.mxu0 0.0
        %602 = vmatprep.subr.mxu0 0.0
        %603 = vmatpush1.msra.mxu0 0.0
        %604 = vmatprep.subr.mxu0 0.0
        %605 = vmatpush1.msra.mxu0 0.0
        %606 = vmatprep.subr.mxu0 0.0
        %607 = vmatpush1.msra.mxu0 0.0
        %608 = vmatprep.subr.mxu0 0.0
        %609 = vmatpush1.msra.mxu0 0.0
        %610 = vmatprep.subr.mxu0 0.0
        %611 = vmatpush1.msra.mxu0 0.0
        %612 = vmatprep.subr.mxu0 0.0
        %613 = vmatpush1.msra.mxu0 0.0
        %614 = vmatprep.subr.mxu0 0.0
        %615 = vmatpush1.msra.mxu0 0.0
        %616 = vmatprep.subr.mxu0 0.0
        %617 = vmatpush1.msra.mxu0 0.0
        %618 = vmatprep.subr.mxu0 0.0
        %619 = vmatpush1.msra.mxu0 0.0
        %620 = vmatprep.subr.mxu0 0.0
        %621 = vmatpush1.msra.mxu0 0.0
        %622 = vmatprep.subr.mxu0 0.0
        %623 = vmatpush1.msra.mxu0 0.0
        %624 = vmatprep.subr.mxu0 0.0
        %625 = vmatpush1.msra.mxu0 0.0
        %626 = vmatprep.subr.mxu0 0.0
        %627 = vmatpush1.msra.mxu0 0.0
        %628 = vmatprep.subr.mxu0 0.0
        %629 = vmatpush1.msra.mxu0 0.0
        %630 = vmatprep.subr.mxu0 0.0
        %631 = vmatpush1.msra.mxu0 0.0
        %632 = vmatprep.subr.mxu0 0.0
        %633 = vmatpush1.msra.mxu0 0.0
        %634 = vmatprep.subr.mxu0 0.0
        %635 = vmatpush1.msra.mxu0 0.0
        %636 = vmatprep.subr.mxu0 0.0
        %637 = vmatpush1.msra.mxu0 0.0
        %638 = vmatprep.subr.mxu0 0.0
        %639 = vmatpush1.msra.mxu0 0.0
        %640 = vmatprep.mubr.f32.mxu0 0.0
        %641 = vmatmul.mubr.f32.gmra.mrb[0].mxu0 %v574
        %v642 = vpop.f32.mrb[0].mxu0
        %v643 = vadd.f32 %v570, %v642
        %v644 = vpop.f32.mrb[0].mxu0
        %645 = vdwg.mxu0
        %v646 = vld [vmem:[%s4] sm:$0xff]
        %v647 = vld [vmem:[%s4 + $0x8] sm:$0xff]
        %v648 = vld [vmem:[%s4 + $0x10] sm:$0xff]
        %v649 = vld [vmem:[%s4 + $0x18] sm:$0xff]
        %v650 = vld [vmem:[%s5] sm:$0x1]
        %v652 = vlaneseq
        %v653 = vshrl.u32 %v652, 7
        %v654 = vsub.s32 0, %v653
        %v655 = vrot.slane %v650, %v654
        %v658 = vsel %vm572, %v559, 0
        %660 = vmatprep.subr.mxu0 0.0
        %661 = vmatpush1.msra.mxu0 %v646
        %662 = vmatprep.subr.mxu0 0.0
        %663 = vmatpush1.msra.mxu0 %v647
        %664 = vmatprep.subr.mxu0 0.0
        %665 = vmatpush1.msra.mxu0 %v648
        %666 = vmatprep.subr.mxu0 0.0
        %667 = vmatpush1.msra.mxu0 %v649
        %668 = vmatprep.subr.mxu0 0.0
        %669 = vmatpush1.msra.mxu0 0.0
        %670 = vmatprep.subr.mxu0 0.0
        %671 = vmatpush1.msra.mxu0 0.0
        %672 = vmatprep.subr.mxu0 0.0
        %673 = vmatpush1.msra.mxu0 0.0
        %674 = vmatprep.subr.mxu0 0.0
        %675 = vmatpush1.msra.mxu0 0.0
        %676 = vmatprep.subr.mxu0 0.0
        %677 = vmatpush1.msra.mxu0 0.0
        %678 = vmatprep.subr.mxu0 0.0
        %679 = vmatpush1.msra.mxu0 0.0
        %680 = vmatprep.subr.mxu0 0.0
        %681 = vmatpush1.msra.mxu0 0.0
        %682 = vmatprep.subr.mxu0 0.0
        %683 = vmatpush1.msra.mxu0 0.0
        %684 = vmatprep.subr.mxu0 0.0
        %685 = vmatpush1.msra.mxu0 0.0
        %686 = vmatprep.subr.mxu0 0.0
        %687 = vmatpush1.msra.mxu0 0.0
        %688 = vmatprep.subr.mxu0 0.0
        %689 = vmatpush1.msra.mxu0 0.0
        %690 = vmatprep.subr.mxu0 0.0
        %691 = vmatpush1.msra.mxu0 0.0
        %692 = vmatprep.subr.mxu0 0.0
        %693 = vmatpush1.msra.mxu0 0.0
        %694 = vmatprep.subr.mxu0 0.0
        %695 = vmatpush1.msra.mxu0 0.0
        %696 = vmatprep.subr.mxu0 0.0
        %697 = vmatpush1.msra.mxu0 0.0
        %698 = vmatprep.subr.mxu0 0.0
        %699 = vmatpush1.msra.mxu0 0.0
        %700 = vmatprep.subr.mxu0 0.0
        %701 = vmatpush1.msra.mxu0 0.0
        %702 = vmatprep.subr.mxu0 0.0
        %703 = vmatpush1.msra.mxu0 0.0
        %704 = vmatprep.subr.mxu0 0.0
        %705 = vmatpush1.msra.mxu0 0.0
        %706 = vmatprep.subr.mxu0 0.0
        %707 = vmatpush1.msra.mxu0 0.0
        %708 = vmatprep.subr.mxu0 0.0
        %709 = vmatpush1.msra.mxu0 0.0
        %710 = vmatprep.subr.mxu0 0.0
        %711 = vmatpush1.msra.mxu0 0.0
        %712 = vmatprep.subr.mxu0 0.0
        %713 = vmatpush1.msra.mxu0 0.0
        %714 = vmatprep.subr.mxu0 0.0
        %715 = vmatpush1.msra.mxu0 0.0
        %716 = vmatprep.subr.mxu0 0.0
        %717 = vmatpush1.msra.mxu0 0.0
        %718 = vmatprep.subr.mxu0 0.0
        %719 = vmatpush1.msra.mxu0 0.0
        %720 = vmatprep.subr.mxu0 0.0
        %721 = vmatpush1.msra.mxu0 0.0
        %722 = vmatprep.subr.mxu0 0.0
        %723 = vmatpush1.msra.mxu0 0.0
        %724 = vmatprep.mubr.f32.mxu0 0.0
        %725 = vmatmul.mubr.f32.gmra.mrb[0].mxu0 %v658
        %v726 = vpop.f32.mrb[0].mxu0
        %v727 = vadd.f32 %v655, %v726
        %v728 = vpop.f32.mrb[0].mxu0
        %729 = vdwg.mxu0
        %731 = vrot.lane.b32.xlu0 %v643, 120
        %v732 = vpop.permute.xlu0 %731
        %733 = vrot.lane.b32.xlu0 %v643, 112
        %v734 = vpop.permute.xlu0 %733
        %735 = vrot.lane.b32.xlu0 %v643, 104
        %v736 = vpop.permute.xlu0 %735
        %738 = vrot.lane.b32.xlu0 %v727, 120
        %v739 = vpop.permute.xlu0 %738
        %740 = vrot.lane.b32.xlu0 %v727, 112
        %v741 = vpop.permute.xlu0 %740
        %742 = vrot.lane.b32.xlu0 %v727, 104
        %v743 = vpop.permute.xlu0 %742
        %vm744 = vcmask 64512
        %v745 = vsel %vm744, %v643, 0
        %v747 = vsel %vm744, %v727, 0
        %749 = vmatprep.subr.mxu0 0.0
        %750 = vmatpush1.xpose.msra.mxu0 %v747
        %751 = vmatprep.subr.mxu0 0.0
        %752 = vmatpush1.xpose.msra.mxu0 0.0
        %753 = vmatprep.subr.mxu0 0.0
        %754 = vmatpush1.xpose.msra.mxu0 0.0
        %755 = vmatprep.subr.mxu0 0.0
        %756 = vmatpush1.xpose.msra.mxu0 0.0
        %757 = vmatprep.subr.mxu0 0.0
        %758 = vmatpush1.xpose.msra.mxu0 0.0
        %759 = vmatprep.subr.mxu0 0.0
        %760 = vmatpush1.xpose.msra.mxu0 0.0
        %761 = vmatprep.subr.mxu0 0.0
        %762 = vmatpush1.xpose.msra.mxu0 0.0
        %763 = vmatprep.subr.mxu0 0.0
        %764 = vmatpush1.xpose.msra.mxu0 0.0
        %765 = vmatprep.subr.mxu0 0.0
        %766 = vmatpush1.xpose.msra.mxu0 0.0
        %767 = vmatprep.subr.mxu0 0.0
        %768 = vmatpush1.xpose.msra.mxu0 0.0
        %769 = vmatprep.subr.mxu0 0.0
        %770 = vmatpush1.xpose.msra.mxu0 0.0
        %771 = vmatprep.subr.mxu0 0.0
        %772 = vmatpush1.xpose.msra.mxu0 0.0
        %773 = vmatprep.subr.mxu0 0.0
        %774 = vmatpush1.xpose.msra.mxu0 0.0
        %775 = vmatprep.subr.mxu0 0.0
        %776 = vmatpush1.xpose.msra.mxu0 0.0
        %777 = vmatprep.subr.mxu0 0.0
        %778 = vmatpush1.xpose.msra.mxu0 0.0
        %779 = vmatprep.subr.mxu0 0.0
        %780 = vmatpush1.xpose.msra.mxu0 0.0
        %781 = vmatprep.subr.mxu0 0.0
        %782 = vmatpush1.xpose.msra.mxu0 0.0
        %783 = vmatprep.subr.mxu0 0.0
        %784 = vmatpush1.xpose.msra.mxu0 0.0
        %785 = vmatprep.subr.mxu0 0.0
        %786 = vmatpush1.xpose.msra.mxu0 0.0
        %787 = vmatprep.subr.mxu0 0.0
        %788 = vmatpush1.xpose.msra.mxu0 0.0
        %789 = vmatprep.subr.mxu0 0.0
        %790 = vmatpush1.xpose.msra.mxu0 0.0
        %791 = vmatprep.subr.mxu0 0.0
        %792 = vmatpush1.xpose.msra.mxu0 0.0
        %793 = vmatprep.subr.mxu0 0.0
        %794 = vmatpush1.xpose.msra.mxu0 0.0
        %795 = vmatprep.subr.mxu0 0.0
        %796 = vmatpush1.xpose.msra.mxu0 0.0
        %797 = vmatprep.subr.mxu0 0.0
        %798 = vmatpush1.xpose.msra.mxu0 0.0
        %799 = vmatprep.subr.mxu0 0.0
        %800 = vmatpush1.xpose.msra.mxu0 0.0
        %801 = vmatprep.subr.mxu0 0.0
        %802 = vmatpush1.xpose.msra.mxu0 0.0
        %803 = vmatprep.subr.mxu0 0.0
        %804 = vmatpush1.xpose.msra.mxu0 0.0
        %805 = vmatprep.subr.mxu0 0.0
        %806 = vmatpush1.xpose.msra.mxu0 0.0
        %807 = vmatprep.subr.mxu0 0.0
        %808 = vmatpush1.xpose.msra.mxu0 0.0
        %809 = vmatprep.subr.mxu0 0.0
        %810 = vmatpush1.xpose.msra.mxu0 0.0
        %811 = vmatprep.subr.mxu0 0.0
        %812 = vmatpush1.xpose.msra.mxu0 0.0
        %813 = vmatprep.mubr.f32.mxu0 0.0
        %814 = vmatmul.mubr.f32.gmra.mrb[0].mxu0 %v745
        %v815 = vpop.f32.mrb[0].mxu0
        %v816 = vadd.f32 0.0, %v815
        %v817 = vpop.f32.mrb[0].mxu0
        %818 = vdwg.mxu0
        %v819 = vsel %vm744, %v732, 0
        %v821 = vsel %vm744, %v739, 0
        %823 = vmatprep.subr.mxu0 0.0
        %824 = vmatpush1.xpose.msra.mxu0 %v821
        %825 = vmatprep.subr.mxu0 0.0
        %826 = vmatpush1.xpose.msra.mxu0 0.0
        %827 = vmatprep.subr.mxu0 0.0
        %828 = vmatpush1.xpose.msra.mxu0 0.0
        %829 = vmatprep.subr.mxu0 0.0
        %830 = vmatpush1.xpose.msra.mxu0 0.0
        %831 = vmatprep.subr.mxu0 0.0
        %832 = vmatpush1.xpose.msra.mxu0 0.0
        %833 = vmatprep.subr.mxu0 0.0
        %834 = vmatpush1.xpose.msra.mxu0 0.0
        %835 = vmatprep.subr.mxu0 0.0
        %836 = vmatpush1.xpose.msra.mxu0 0.0
        %837 = vmatprep.subr.mxu0 0.0
        %838 = vmatpush1.xpose.msra.mxu0 0.0
        %839 = vmatprep.subr.mxu0 0.0
        %840 = vmatpush1.xpose.msra.mxu0 0.0
        %841 = vmatprep.subr.mxu0 0.0
        %842 = vmatpush1.xpose.msra.mxu0 0.0
        %843 = vmatprep.subr.mxu0 0.0
        %844 = vmatpush1.xpose.msra.mxu0 0.0
        %845 = vmatprep.subr.mxu0 0.0
        %846 = vmatpush1.xpose.msra.mxu0 0.0
        %847 = vmatprep.subr.mxu0 0.0
        %848 = vmatpush1.xpose.msra.mxu0 0.0
        %849 = vmatprep.subr.mxu0 0.0
        %850 = vmatpush1.xpose.msra.mxu0 0.0
        %851 = vmatprep.subr.mxu0 0.0
        %852 = vmatpush1.xpose.msra.mxu0 0.0
        %853 = vmatprep.subr.mxu0 0.0
        %854 = vmatpush1.xpose.msra.mxu0 0.0
        %855 = vmatprep.subr.mxu0 0.0
        %856 = vmatpush1.xpose.msra.mxu0 0.0
        %857 = vmatprep.subr.mxu0 0.0
        %858 = vmatpush1.xpose.msra.mxu0 0.0
        %859 = vmatprep.subr.mxu0 0.0
        %860 = vmatpush1.xpose.msra.mxu0 0.0
        %861 = vmatprep.subr.mxu0 0.0
        %862 = vmatpush1.xpose.msra.mxu0 0.0
        %863 = vmatprep.subr.mxu0 0.0
        %864 = vmatpush1.xpose.msra.mxu0 0.0
        %865 = vmatprep.subr.mxu0 0.0
        %866 = vmatpush1.xpose.msra.mxu0 0.0
        %867 = vmatprep.subr.mxu0 0.0
        %868 = vmatpush1.xpose.msra.mxu0 0.0
        %869 = vmatprep.subr.mxu0 0.0
        %870 = vmatpush1.xpose.msra.mxu0 0.0
        %871 = vmatprep.subr.mxu0 0.0
        %872 = vmatpush1.xpose.msra.mxu0 0.0
        %873 = vmatprep.subr.mxu0 0.0
        %874 = vmatpush1.xpose.msra.mxu0 0.0
        %875 = vmatprep.subr.mxu0 0.0
        %876 = vmatpush1.xpose.msra.mxu0 0.0
        %877 = vmatprep.subr.mxu0 0.0
        %878 = vmatpush1.xpose.msra.mxu0 0.0
        %879 = vmatprep.subr.mxu0 0.0
        %880 = vmatpush1.xpose.msra.mxu0 0.0
        %881 = vmatprep.subr.mxu0 0.0
        %882 = vmatpush1.xpose.msra.mxu0 0.0
        %883 = vmatprep.subr.mxu0 0.0
        %884 = vmatpush1.xpose.msra.mxu0 0.0
        %885 = vmatprep.subr.mxu0 0.0
        %886 = vmatpush1.xpose.msra.mxu0 0.0
        %887 = vmatprep.mubr.f32.mxu0 0.0
        %888 = vmatmul.mubr.f32.gmra.mrb[0].mxu0 %v819
        %v889 = vpop.f32.mrb[0].mxu0
        %v890 = vadd.f32 0.0, %v889
        %v891 = vpop.f32.mrb[0].mxu0
        %892 = vdwg.mxu0
        %v893 = vsel %vm744, %v734, 0
        %v895 = vsel %vm744, %v741, 0
        %897 = vmatprep.subr.mxu0 0.0
        %898 = vmatpush1.xpose.msra.mxu0 %v895
        %899 = vmatprep.subr.mxu0 0.0
        %900 = vmatpush1.xpose.msra.mxu0 0.0
        %901 = vmatprep.subr.mxu0 0.0
        %902 = vmatpush1.xpose.msra.mxu0 0.0
        %903 = vmatprep.subr.mxu0 0.0
        %904 = vmatpush1.xpose.msra.mxu0 0.0
        %905 = vmatprep.subr.mxu0 0.0
        %906 = vmatpush1.xpose.msra.mxu0 0.0
        %907 = vmatprep.subr.mxu0 0.0
        %908 = vmatpush1.xpose.msra.mxu0 0.0
        %909 = vmatprep.subr.mxu0 0.0
        %910 = vmatpush1.xpose.msra.mxu0 0.0
        %911 = vmatprep.subr.mxu0 0.0
        %912 = vmatpush1.xpose.msra.mxu0 0.0
        %913 = vmatprep.subr.mxu0 0.0
        %914 = vmatpush1.xpose.msra.mxu0 0.0
        %915 = vmatprep.subr.mxu0 0.0
        %916 = vmatpush1.xpose.msra.mxu0 0.0
        %917 = vmatprep.subr.mxu0 0.0
        %918 = vmatpush1.xpose.msra.mxu0 0.0
        %919 = vmatprep.subr.mxu0 0.0
        %920 = vmatpush1.xpose.msra.mxu0 0.0
        %921 = vmatprep.subr.mxu0 0.0
        %922 = vmatpush1.xpose.msra.mxu0 0.0
        %923 = vmatprep.subr.mxu0 0.0
        %924 = vmatpush1.xpose.msra.mxu0 0.0
        %925 = vmatprep.subr.mxu0 0.0
        %926 = vmatpush1.xpose.msra.mxu0 0.0
        %927 = vmatprep.subr.mxu0 0.0
        %928 = vmatpush1.xpose.msra.mxu0 0.0
        %929 = vmatprep.subr.mxu0 0.0
        %930 = vmatpush1.xpose.msra.mxu0 0.0
        %931 = vmatprep.subr.mxu0 0.0
        %932 = vmatpush1.xpose.msra.mxu0 0.0
        %933 = vmatprep.subr.mxu0 0.0
        %934 = vmatpush1.xpose.msra.mxu0 0.0
        %935 = vmatprep.subr.mxu0 0.0
        %936 = vmatpush1.xpose.msra.mxu0 0.0
        %937 = vmatprep.subr.mxu0 0.0
        %938 = vmatpush1.xpose.msra.mxu0 0.0
        %939 = vmatprep.subr.mxu0 0.0
        %940 = vmatpush1.xpose.msra.mxu0 0.0
        %941 = vmatprep.subr.mxu0 0.0
        %942 = vmatpush1.xpose.msra.mxu0 0.0
        %943 = vmatprep.subr.mxu0 0.0
        %944 = vmatpush1.xpose.msra.mxu0 0.0
        %945 = vmatprep.subr.mxu0 0.0
        %946 = vmatpush1.xpose.msra.mxu0 0.0
        %947 = vmatprep.subr.mxu0 0.0
        %948 = vmatpush1.xpose.msra.mxu0 0.0
        %949 = vmatprep.subr.mxu0 0.0
        %950 = vmatpush1.xpose.msra.mxu0 0.0
        %951 = vmatprep.subr.mxu0 0.0
        %952 = vmatpush1.xpose.msra.mxu0 0.0
        %953 = vmatprep.subr.mxu0 0.0
        %954 = vmatpush1.xpose.msra.mxu0 0.0
        %955 = vmatprep.subr.mxu0 0.0
        %956 = vmatpush1.xpose.msra.mxu0 0.0
        %957 = vmatprep.subr.mxu0 0.0
        %958 = vmatpush1.xpose.msra.mxu0 0.0
        %959 = vmatprep.subr.mxu0 0.0
        %960 = vmatpush1.xpose.msra.mxu0 0.0
        %961 = vmatprep.mubr.f32.mxu0 0.0
        %962 = vmatmul.mubr.f32.gmra.mrb[0].mxu0 %v893
        %v963 = vpop.f32.mrb[0].mxu0
        %v964 = vadd.f32 0.0, %v963
        %v965 = vpop.f32.mrb[0].mxu0
        %966 = vdwg.mxu0
        %v967 = vsel %vm744, %v736, 0
        %v969 = vsel %vm744, %v743, 0
        %971 = vmatprep.subr.mxu0 0.0
        %972 = vmatpush1.xpose.msra.mxu0 %v969
        %973 = vmatprep.subr.mxu0 0.0
        %974 = vmatpush1.xpose.msra.mxu0 0.0
        %975 = vmatprep.subr.mxu0 0.0
        %976 = vmatpush1.xpose.msra.mxu0 0.0
        %977 = vmatprep.subr.mxu0 0.0
        %978 = vmatpush1.xpose.msra.mxu0 0.0
        %979 = vmatprep.subr.mxu0 0.0
        %980 = vmatpush1.xpose.msra.mxu0 0.0
        %981 = vmatprep.subr.mxu0 0.0
        %982 = vmatpush1.xpose.msra.mxu0 0.0
        %983 = vmatprep.subr.mxu0 0.0
        %984 = vmatpush1.xpose.msra.mxu0 0.0
        %985 = vmatprep.subr.mxu0 0.0
        %986 = vmatpush1.xpose.msra.mxu0 0.0
        %987 = vmatprep.subr.mxu0 0.0
        %988 = vmatpush1.xpose.msra.mxu0 0.0
        %989 = vmatprep.subr.mxu0 0.0
        %990 = vmatpush1.xpose.msra.mxu0 0.0
        %991 = vmatprep.subr.mxu0 0.0
        %992 = vmatpush1.xpose.msra.mxu0 0.0
        %993 = vmatprep.subr.mxu0 0.0
        %994 = vmatpush1.xpose.msra.mxu0 0.0
        %995 = vmatprep.subr.mxu0 0.0
        %996 = vmatpush1.xpose.msra.mxu0 0.0
        %997 = vmatprep.subr.mxu0 0.0
        %998 = vmatpush1.xpose.msra.mxu0 0.0
        %999 = vmatprep.subr.mxu0 0.0
        %1000 = vmatpush1.xpose.msra.mxu0 0.0
        %1001 = vmatprep.subr.mxu0 0.0
        %1002 = vmatpush1.xpose.msra.mxu0 0.0
        %1003 = vmatprep.subr.mxu0 0.0
        %1004 = vmatpush1.xpose.msra.mxu0 0.0
        %1005 = vmatprep.subr.mxu0 0.0
        %1006 = vmatpush1.xpose.msra.mxu0 0.0
        %1007 = vmatprep.subr.mxu0 0.0
        %1008 = vmatpush1.xpose.msra.mxu0 0.0
        %1009 = vmatprep.subr.mxu0 0.0
        %1010 = vmatpush1.xpose.msra.mxu0 0.0
        %1011 = vmatprep.subr.mxu0 0.0
        %1012 = vmatpush1.xpose.msra.mxu0 0.0
        %1013 = vmatprep.subr.mxu0 0.0
        %1014 = vmatpush1.xpose.msra.mxu0 0.0
        %1015 = vmatprep.subr.mxu0 0.0
        %1016 = vmatpush1.xpose.msra.mxu0 0.0
        %1017 = vmatprep.subr.mxu0 0.0
        %1018 = vmatpush1.xpose.msra.mxu0 0.0
        %1019 = vmatprep.subr.mxu0 0.0
        %1020 = vmatpush1.xpose.msra.mxu0 0.0
        %1021 = vmatprep.subr.mxu0 0.0
        %1022 = vmatpush1.xpose.msra.mxu0 0.0
        %1023 = vmatprep.subr.mxu0 0.0
        %1024 = vmatpush1.xpose.msra.mxu0 0.0
        %1025 = vmatprep.subr.mxu0 0.0
        %1026 = vmatpush1.xpose.msra.mxu0 0.0
        %1027 = vmatprep.subr.mxu0 0.0
        %1028 = vmatpush1.xpose.msra.mxu0 0.0
        %1029 = vmatprep.subr.mxu0 0.0
        %1030 = vmatpush1.xpose.msra.mxu0 0.0
        %1031 = vmatprep.subr.mxu0 0.0
        %1032 = vmatpush1.xpose.msra.mxu0 0.0
        %1033 = vmatprep.subr.mxu0 0.0
        %1034 = vmatpush1.xpose.msra.mxu0 0.0
        %1035 = vmatprep.mubr.f32.mxu0 0.0
        %1036 = vmatmul.mubr.f32.gmra.mrb[0].mxu0 %v967
        %v1037 = vpop.f32.mrb[0].mxu0
        %v1038 = vadd.f32 0.0, %v1037
        %v1039 = vpop.f32.mrb[0].mxu0
        %1040 = vdwg.mxu0
        %v1041 = vmul.f32 %v816, 0.35355338
        %v1042 = vmul.f32 %v890, 0.35355338
        %v1043 = vmul.f32 %v964, 0.35355338
        %v1044 = vmul.f32 %v1038, 0.35355338
        %v1045 = vsel %vm744, %v1041, -inf
        %1046 = vmax.xlane.f32.xlu0 %v1045
        %v1047 = vpop.xlane.xlu0 %1046
        %v1048 = vsel %vm744, %v1042, -inf
        %1049 = vmax.xlane.f32.xlu0 %v1048
        %v1050 = vpop.xlane.xlu0 %1049
        %v1051 = vsel %vm744, %v1043, -inf
        %1052 = vmax.xlane.f32.xlu0 %v1051
        %v1053 = vpop.xlane.xlu0 %1052
        %v1054 = vsel %vm744, %v1044, -inf
        %1055 = vmax.xlane.f32.xlu0 %v1054
        %v1056 = vpop.xlane.xlu0 %1055
        %v1057 = vsub.f32 %v1041, %v1047
        %v1058 = vsub.f32 %v1042, %v1050
        %v1059 = vsub.f32 %v1043, %v1053
        %v1060 = vsub.f32 %v1044, %v1056
        %v1061 = vmul.f32 %v1057, 1.442695
        %v1062 = vpow.pop %v1061
        %v1063 = vmul.f32 %v1058, 1.442695
        %v1064 = vpow.pop %v1063
        %v1065 = vmul.f32 %v1059, 1.442695
        %v1066 = vpow.pop %v1065
        %v1067 = vmul.f32 %v1060, 1.442695
        %v1068 = vpow.pop %v1067
        %v1069 = vsel %vm744, %v1062, 0.0
        %1070 = vadd.xlane.f32.xlu0 %v1069
        %v1071 = vpop.xlane.xlu0 %1070
        %v1072 = vsel %vm744, %v1064, 0.0
        %1073 = vadd.xlane.f32.xlu0 %v1072
        %v1074 = vpop.xlane.xlu0 %1073
        %v1075 = vsel %vm744, %v1066, 0.0
        %1076 = vadd.xlane.f32.xlu0 %v1075
        %v1077 = vpop.xlane.xlu0 %1076
        %v1078 = vsel %vm744, %v1068, 0.0
        %1079 = vadd.xlane.f32.xlu0 %v1078
        %v1080 = vpop.xlane.xlu0 %1079
        %v1081 = vrcp.pop %v1071
        %v1082 = vrcp.pop %v1074
        %v1083 = vrcp.pop %v1077
        %v1084 = vrcp.pop %v1080
        %v1085 = vmul.f32 %v1062, %v1081
        %v1086 = vmul.f32 %v1064, %v1082
        %v1087 = vmul.f32 %v1066, %v1083
        %v1088 = vmul.f32 %v1068, %v1084
        %1089 = vrot.lane.b32.xlu0 %v727, 96
        %v1090 = vpop.permute.xlu0 %1089
        %v1093 = vsel %vm744, %v1085, 0
        %1095 = vmatprep.subr.mxu0 0.0
        %1096 = vmatpush1.msra.mxu0 %v1090
        %1097 = vmatprep.subr.mxu0 0.0
        %1098 = vmatpush1.msra.mxu0 0.0
        %1099 = vmatprep.subr.mxu0 0.0
        %1100 = vmatpush1.msra.mxu0 0.0
        %1101 = vmatprep.subr.mxu0 0.0
        %1102 = vmatpush1.msra.mxu0 0.0
        %1103 = vmatprep.subr.mxu0 0.0
        %1104 = vmatpush1.msra.mxu0 0.0
        %1105 = vmatprep.subr.mxu0 0.0
        %1106 = vmatpush1.msra.mxu0 0.0
        %1107 = vmatprep.subr.mxu0 0.0
        %1108 = vmatpush1.msra.mxu0 0.0
        %1109 = vmatprep.subr.mxu0 0.0
        %1110 = vmatpush1.msra.mxu0 0.0
        %1111 = vmatprep.subr.mxu0 0.0
        %1112 = vmatpush1.msra.mxu0 0.0
        %1113 = vmatprep.subr.mxu0 0.0
        %1114 = vmatpush1.msra.mxu0 0.0
        %1115 = vmatprep.subr.mxu0 0.0
        %1116 = vmatpush1.msra.mxu0 0.0
        %1117 = vmatprep.subr.mxu0 0.0
        %1118 = vmatpush1.msra.mxu0 0.0
        %1119 = vmatprep.subr.mxu0 0.0
        %1120 = vmatpush1.msra.mxu0 0.0
        %1121 = vmatprep.subr.mxu0 0.0
        %1122 = vmatpush1.msra.mxu0 0.0
        %1123 = vmatprep.subr.mxu0 0.0
        %1124 = vmatpush1.msra.mxu0 0.0
        %1125 = vmatprep.subr.mxu0 0.0
        %1126 = vmatpush1.msra.mxu0 0.0
        %1127 = vmatprep.subr.mxu0 0.0
        %1128 = vmatpush1.msra.mxu0 0.0
        %1129 = vmatprep.subr.mxu0 0.0
        %1130 = vmatpush1.msra.mxu0 0.0
        %1131 = vmatprep.subr.mxu0 0.0
        %1132 = vmatpush1.msra.mxu0 0.0
        %1133 = vmatprep.subr.mxu0 0.0
        %1134 = vmatpush1.msra.mxu0 0.0
        %1135 = vmatprep.subr.mxu0 0.0
        %1136 = vmatpush1.msra.mxu0 0.0
        %1137 = vmatprep.subr.mxu0 0.0
        %1138 = vmatpush1.msra.mxu0 0.0
        %1139 = vmatprep.subr.mxu0 0.0
        %1140 = vmatpush1.msra.mxu0 0.0
        %1141 = vmatprep.subr.mxu0 0.0
        %1142 = vmatpush1.msra.mxu0 0.0
        %1143 = vmatprep.subr.mxu0 0.0
        %1144 = vmatpush1.msra.mxu0 0.0
        %1145 = vmatprep.subr.mxu0 0.0
        %1146 = vmatpush1.msra.mxu0 0.0
        %1147 = vmatprep.subr.mxu0 0.0
        %1148 = vmatpush1.msra.mxu0 0.0
        %1149 = vmatprep.subr.mxu0 0.0
        %1150 = vmatpush1.msra.mxu0 0.0
        %1151 = vmatprep.subr.mxu0 0.0
        %1152 = vmatpush1.msra.mxu0 0.0
        %1153 = vmatprep.subr.mxu0 0.0
        %1154 = vmatpush1.msra.mxu0 0.0
        %1155 = vmatprep.subr.mxu0 0.0
        %1156 = vmatpush1.msra.mxu0 0.0
        %1157 = vmatprep.subr.mxu0 0.0
        %1158 = vmatpush1.msra.mxu0 0.0
        %1159 = vmatprep.mubr.f32.mxu0 0.0
        %1160 = vmatmul.mubr.f32.gmra.mrb[0].mxu0 %v1093
        %v1161 = vpop.f32.mrb[0].mxu0
        %v1162 = vadd.f32 0.0, %v1161
        %v1163 = vpop.f32.mrb[0].mxu0
        %1164 = vdwg.mxu0
        %1165 = vrot.lane.b32.xlu0 %v739, 96
        %v1166 = vpop.permute.xlu0 %1165
        %v1169 = vsel %vm744, %v1086, 0
        %1171 = vmatprep.subr.mxu0 0.0
        %1172 = vmatpush1.msra.mxu0 %v1166
        %1173 = vmatprep.subr.mxu0 0.0
        %1174 = vmatpush1.msra.mxu0 0.0
        %1175 = vmatprep.subr.mxu0 0.0
        %1176 = vmatpush1.msra.mxu0 0.0
        %1177 = vmatprep.subr.mxu0 0.0
        %1178 = vmatpush1.msra.mxu0 0.0
        %1179 = vmatprep.subr.mxu0 0.0
        %1180 = vmatpush1.msra.mxu0 0.0
        %1181 = vmatprep.subr.mxu0 0.0
        %1182 = vmatpush1.msra.mxu0 0.0
        %1183 = vmatprep.subr.mxu0 0.0
        %1184 = vmatpush1.msra.mxu0 0.0
        %1185 = vmatprep.subr.mxu0 0.0
        %1186 = vmatpush1.msra.mxu0 0.0
        %1187 = vmatprep.subr.mxu0 0.0
        %1188 = vmatpush1.msra.mxu0 0.0
        %1189 = vmatprep.subr.mxu0 0.0
        %1190 = vmatpush1.msra.mxu0 0.0
        %1191 = vmatprep.subr.mxu0 0.0
        %1192 = vmatpush1.msra.mxu0 0.0
        %1193 = vmatprep.subr.mxu0 0.0
        %1194 = vmatpush1.msra.mxu0 0.0
        %1195 = vmatprep.subr.mxu0 0.0
        %1196 = vmatpush1.msra.mxu0 0.0
        %1197 = vmatprep.subr.mxu0 0.0
        %1198 = vmatpush1.msra.mxu0 0.0
        %1199 = vmatprep.subr.mxu0 0.0
        %1200 = vmatpush1.msra.mxu0 0.0
        %1201 = vmatprep.subr.mxu0 0.0
        %1202 = vmatpush1.msra.mxu0 0.0
        %1203 = vmatprep.subr.mxu0 0.0
        %1204 = vmatpush1.msra.mxu0 0.0
        %1205 = vmatprep.subr.mxu0 0.0
        %1206 = vmatpush1.msra.mxu0 0.0
        %1207 = vmatprep.subr.mxu0 0.0
        %1208 = vmatpush1.msra.mxu0 0.0
        %1209 = vmatprep.subr.mxu0 0.0
        %1210 = vmatpush1.msra.mxu0 0.0
        %1211 = vmatprep.subr.mxu0 0.0
        %1212 = vmatpush1.msra.mxu0 0.0
        %1213 = vmatprep.subr.mxu0 0.0
        %1214 = vmatpush1.msra.mxu0 0.0
        %1215 = vmatprep.subr.mxu0 0.0
        %1216 = vmatpush1.msra.mxu0 0.0
        %1217 = vmatprep.subr.mxu0 0.0
        %1218 = vmatpush1.msra.mxu0 0.0
        %1219 = vmatprep.subr.mxu0 0.0
        %1220 = vmatpush1.msra.mxu0 0.0
        %1221 = vmatprep.subr.mxu0 0.0
        %1222 = vmatpush1.msra.mxu0 0.0
        %1223 = vmatprep.subr.mxu0 0.0
        %1224 = vmatpush1.msra.mxu0 0.0
        %1225 = vmatprep.subr.mxu0 0.0
        %1226 = vmatpush1.msra.mxu0 0.0
        %1227 = vmatprep.subr.mxu0 0.0
        %1228 = vmatpush1.msra.mxu0 0.0
        %1229 = vmatprep.subr.mxu0 0.0
        %1230 = vmatpush1.msra.mxu0 0.0
        %1231 = vmatprep.subr.mxu0 0.0
        %1232 = vmatpush1.msra.mxu0 0.0
        %1233 = vmatprep.subr.mxu0 0.0
        %1234 = vmatpush1.msra.mxu0 0.0
        %1235 = vmatprep.mubr.f32.mxu0 0.0
        %1236 = vmatmul.mubr.f32.gmra.mrb[0].mxu0 %v1169
        %v1237 = vpop.f32.mrb[0].mxu0
        %v1238 = vadd.f32 0.0, %v1237
        %v1239 = vpop.f32.mrb[0].mxu0
        %1240 = vdwg.mxu0
        %1241 = vrot.lane.b32.xlu0 %v741, 96
        %v1242 = vpop.permute.xlu0 %1241
        %v1245 = vsel %vm744, %v1087, 0
        %1247 = vmatprep.subr.mxu0 0.0
        %1248 = vmatpush1.msra.mxu0 %v1242
        %1249 = vmatprep.subr.mxu0 0.0
        %1250 = vmatpush1.msra.mxu0 0.0
        %1251 = vmatprep.subr.mxu0 0.0
        %1252 = vmatpush1.msra.mxu0 0.0
        %1253 = vmatprep.subr.mxu0 0.0
        %1254 = vmatpush1.msra.mxu0 0.0
        %1255 = vmatprep.subr.mxu0 0.0
        %1256 = vmatpush1.msra.mxu0 0.0
        %1257 = vmatprep.subr.mxu0 0.0
        %1258 = vmatpush1.msra.mxu0 0.0
        %1259 = vmatprep.subr.mxu0 0.0
        %1260 = vmatpush1.msra.mxu0 0.0
        %1261 = vmatprep.subr.mxu0 0.0
        %1262 = vmatpush1.msra.mxu0 0.0
        %1263 = vmatprep.subr.mxu0 0.0
        %1264 = vmatpush1.msra.mxu0 0.0
        %1265 = vmatprep.subr.mxu0 0.0
        %1266 = vmatpush1.msra.mxu0 0.0
        %1267 = vmatprep.subr.mxu0 0.0
        %1268 = vmatpush1.msra.mxu0 0.0
        %1269 = vmatprep.subr.mxu0 0.0
        %1270 = vmatpush1.msra.mxu0 0.0
        %1271 = vmatprep.subr.mxu0 0.0
        %1272 = vmatpush1.msra.mxu0 0.0
        %1273 = vmatprep.subr.mxu0 0.0
        %1274 = vmatpush1.msra.mxu0 0.0
        %1275 = vmatprep.subr.mxu0 0.0
        %1276 = vmatpush1.msra.mxu0 0.0
        %1277 = vmatprep.subr.mxu0 0.0
        %1278 = vmatpush1.msra.mxu0 0.0
        %1279 = vmatprep.subr.mxu0 0.0
        %1280 = vmatpush1.msra.mxu0 0.0
        %1281 = vmatprep.subr.mxu0 0.0
        %1282 = vmatpush1.msra.mxu0 0.0
        %1283 = vmatprep.subr.mxu0 0.0
        %1284 = vmatpush1.msra.mxu0 0.0
        %1285 = vmatprep.subr.mxu0 0.0
        %1286 = vmatpush1.msra.mxu0 0.0
        %1287 = vmatprep.subr.mxu0 0.0
        %1288 = vmatpush1.msra.mxu0 0.0
        %1289 = vmatprep.subr.mxu0 0.0
        %1290 = vmatpush1.msra.mxu0 0.0
        %1291 = vmatprep.subr.mxu0 0.0
        %1292 = vmatpush1.msra.mxu0 0.0
        %1293 = vmatprep.subr.mxu0 0.0
        %1294 = vmatpush1.msra.mxu0 0.0
        %1295 = vmatprep.subr.mxu0 0.0
        %1296 = vmatpush1.msra.mxu0 0.0
        %1297 = vmatprep.subr.mxu0 0.0
        %1298 = vmatpush1.msra.mxu0 0.0
        %1299 = vmatprep.subr.mxu0 0.0
        %1300 = vmatpush1.msra.mxu0 0.0
        %1301 = vmatprep.subr.mxu0 0.0
        %1302 = vmatpush1.msra.mxu0 0.0
        %1303 = vmatprep.subr.mxu0 0.0
        %1304 = vmatpush1.msra.mxu0 0.0
        %1305 = vmatprep.subr.mxu0 0.0
        %1306 = vmatpush1.msra.mxu0 0.0
        %1307 = vmatprep.subr.mxu0 0.0
        %1308 = vmatpush1.msra.mxu0 0.0
        %1309 = vmatprep.subr.mxu0 0.0
        %1310 = vmatpush1.msra.mxu0 0.0
        %1311 = vmatprep.mubr.f32.mxu0 0.0
        %1312 = vmatmul.mubr.f32.gmra.mrb[0].mxu0 %v1245
        %v1313 = vpop.f32.mrb[0].mxu0
        %v1314 = vadd.f32 0.0, %v1313
        %v1315 = vpop.f32.mrb[0].mxu0
        %1316 = vdwg.mxu0
        %1317 = vrot.lane.b32.xlu0 %v743, 96
        %v1318 = vpop.permute.xlu0 %1317
        %v1321 = vsel %vm744, %v1088, 0
        %1323 = vmatprep.subr.mxu0 0.0
        %1324 = vmatpush1.msra.mxu0 %v1318
        %1325 = vmatprep.subr.mxu0 0.0
        %1326 = vmatpush1.msra.mxu0 0.0
        %1327 = vmatprep.subr.mxu0 0.0
        %1328 = vmatpush1.msra.mxu0 0.0
        %1329 = vmatprep.subr.mxu0 0.0
        %1330 = vmatpush1.msra.mxu0 0.0
        %1331 = vmatprep.subr.mxu0 0.0
        %1332 = vmatpush1.msra.mxu0 0.0
        %1333 = vmatprep.subr.mxu0 0.0
        %1334 = vmatpush1.msra.mxu0 0.0
        %1335 = vmatprep.subr.mxu0 0.0
        %1336 = vmatpush1.msra.mxu0 0.0
        %1337 = vmatprep.subr.mxu0 0.0
        %1338 = vmatpush1.msra.mxu0 0.0
        %1339 = vmatprep.subr.mxu0 0.0
        %1340 = vmatpush1.msra.mxu0 0.0
        %1341 = vmatprep.subr.mxu0 0.0
        %1342 = vmatpush1.msra.mxu0 0.0
        %1343 = vmatprep.subr.mxu0 0.0
        %1344 = vmatpush1.msra.mxu0 0.0
        %1345 = vmatprep.subr.mxu0 0.0
        %1346 = vmatpush1.msra.mxu0 0.0
        %1347 = vmatprep.subr.mxu0 0.0
        %1348 = vmatpush1.msra.mxu0 0.0
        %1349 = vmatprep.subr.mxu0 0.0
        %1350 = vmatpush1.msra.mxu0 0.0
        %1351 = vmatprep.subr.mxu0 0.0
        %1352 = vmatpush1.msra.mxu0 0.0
        %1353 = vmatprep.subr.mxu0 0.0
        %1354 = vmatpush1.msra.mxu0 0.0
        %1355 = vmatprep.subr.mxu0 0.0
        %1356 = vmatpush1.msra.mxu0 0.0
        %1357 = vmatprep.subr.mxu0 0.0
        %1358 = vmatpush1.msra.mxu0 0.0
        %1359 = vmatprep.subr.mxu0 0.0
        %1360 = vmatpush1.msra.mxu0 0.0
        %1361 = vmatprep.subr.mxu0 0.0
        %1362 = vmatpush1.msra.mxu0 0.0
        %1363 = vmatprep.subr.mxu0 0.0
        %1364 = vmatpush1.msra.mxu0 0.0
        %1365 = vmatprep.subr.mxu0 0.0
        %1366 = vmatpush1.msra.mxu0 0.0
        %1367 = vmatprep.subr.mxu0 0.0
        %1368 = vmatpush1.msra.mxu0 0.0
        %1369 = vmatprep.subr.mxu0 0.0
        %1370 = vmatpush1.msra.mxu0 0.0
        %1371 = vmatprep.subr.mxu0 0.0
        %1372 = vmatpush1.msra.mxu0 0.0
        %1373 = vmatprep.subr.mxu0 0.0
        %1374 = vmatpush1.msra.mxu0 0.0
        %1375 = vmatprep.subr.mxu0 0.0
        %1376 = vmatpush1.msra.mxu0 0.0
        %1377 = vmatprep.subr.mxu0 0.0
        %1378 = vmatpush1.msra.mxu0 0.0
        %1379 = vmatprep.subr.mxu0 0.0
        %1380 = vmatpush1.msra.mxu0 0.0
        %1381 = vmatprep.subr.mxu0 0.0
        %1382 = vmatpush1.msra.mxu0 0.0
        %1383 = vmatprep.subr.mxu0 0.0
        %1384 = vmatpush1.msra.mxu0 0.0
        %1385 = vmatprep.subr.mxu0 0.0
        %1386 = vmatpush1.msra.mxu0 0.0
        %1387 = vmatprep.mubr.f32.mxu0 0.0
        %1388 = vmatmul.mubr.f32.gmra.mrb[0].mxu0 %v1321
        %v1389 = vpop.f32.mrb[0].mxu0
        %v1390 = vadd.f32 0.0, %v1389
        %v1391 = vpop.f32.mrb[0].mxu0
        %1392 = vdwg.mxu0
        %1394 = vrot.lane.b32.xlu0 %v1238, 8
        %v1395 = vpop.permute.xlu0 %1394
        %1398 = vrot.lane.b32.xlu0 %v1314, 16
        %v1399 = vpop.permute.xlu0 %1398
        %1402 = vrot.lane.b32.xlu0 %v1390, 24
        %v1403 = vpop.permute.xlu0 %1402
        %v1405 = vsel %vm744, %v1162, %v1395
        %vm1406 = vcmask 130048
        %v1407 = vsel %vm1406, %v1405, %v1399
        %vm1408 = vcmask 195584
        %v1409 = vsel %vm1408, %v1407, %v1403
        %v1410 = vld [vmem:[%s6] sm:$0xff]
        %v1411 = vld [vmem:[%s6 + $0x8] sm:$0xff]
        %v1412 = vld [vmem:[%s6 + $0x10] sm:$0xff]
        %v1413 = vld [vmem:[%s6 + $0x18] sm:$0xff]
        %v1414 = vld [vmem:[%s7] sm:$0x1]
        %v1416 = vlaneseq
        %v1417 = vshrl.u32 %v1416, 7
        %v1418 = vsub.s32 0, %v1417
        %v1419 = vrot.slane %v1414, %v1418
        %v1422 = vsel %vm572, %v1409, 0
        %1424 = vmatprep.subr.mxu0 0.0
        %1425 = vmatpush1.msra.mxu0 %v1410
        %1426 = vmatprep.subr.mxu0 0.0
        %1427 = vmatpush1.msra.mxu0 %v1411
        %1428 = vmatprep.subr.mxu0 0.0
        %1429 = vmatpush1.msra.mxu0 %v1412
        %1430 = vmatprep.subr.mxu0 0.0
        %1431 = vmatpush1.msra.mxu0 %v1413
        %1432 = vmatprep.subr.mxu0 0.0
        %1433 = vmatpush1.msra.mxu0 0.0
        %1434 = vmatprep.subr.mxu0 0.0
        %1435 = vmatpush1.msra.mxu0 0.0
        %1436 = vmatprep.subr.mxu0 0.0
        %1437 = vmatpush1.msra.mxu0 0.0
        %1438 = vmatprep.subr.mxu0 0.0
        %1439 = vmatpush1.msra.mxu0 0.0
        %1440 = vmatprep.subr.mxu0 0.0
        %1441 = vmatpush1.msra.mxu0 0.0
        %1442 = vmatprep.subr.mxu0 0.0
        %1443 = vmatpush1.msra.mxu0 0.0
        %1444 = vmatprep.subr.mxu0 0.0
        %1445 = vmatpush1.msra.mxu0 0.0
        %1446 = vmatprep.subr.mxu0 0.0
        %1447 = vmatpush1.msra.mxu0 0.0
        %1448 = vmatprep.subr.mxu0 0.0
        %1449 = vmatpush1.msra.mxu0 0.0
        %1450 = vmatprep.subr.mxu0 0.0
        %1451 = vmatpush1.msra.mxu0 0.0
        %1452 = vmatprep.subr.mxu0 0.0
        %1453 = vmatpush1.msra.mxu0 0.0
        %1454 = vmatprep.subr.mxu0 0.0
        %1455 = vmatpush1.msra.mxu0 0.0
        %1456 = vmatprep.subr.mxu0 0.0
        %1457 = vmatpush1.msra.mxu0 0.0
        %1458 = vmatprep.subr.mxu0 0.0
        %1459 = vmatpush1.msra.mxu0 0.0
        %1460 = vmatprep.subr.mxu0 0.0
        %1461 = vmatpush1.msra.mxu0 0.0
        %1462 = vmatprep.subr.mxu0 0.0
        %1463 = vmatpush1.msra.mxu0 0.0
        %1464 = vmatprep.subr.mxu0 0.0
        %1465 = vmatpush1.msra.mxu0 0.0
        %1466 = vmatprep.subr.mxu0 0.0
        %1467 = vmatpush1.msra.mxu0 0.0
        %1468 = vmatprep.subr.mxu0 0.0
        %1469 = vmatpush1.msra.mxu0 0.0
        %1470 = vmatprep.subr.mxu0 0.0
        %1471 = vmatpush1.msra.mxu0 0.0
        %1472 = vmatprep.subr.mxu0 0.0
        %1473 = vmatpush1.msra.mxu0 0.0
        %1474 = vmatprep.subr.mxu0 0.0
        %1475 = vmatpush1.msra.mxu0 0.0
        %1476 = vmatprep.subr.mxu0 0.0
        %1477 = vmatpush1.msra.mxu0 0.0
        %1478 = vmatprep.subr.mxu0 0.0
        %1479 = vmatpush1.msra.mxu0 0.0
        %1480 = vmatprep.subr.mxu0 0.0
        %1481 = vmatpush1.msra.mxu0 0.0
        %1482 = vmatprep.subr.mxu0 0.0
        %1483 = vmatpush1.msra.mxu0 0.0
        %1484 = vmatprep.subr.mxu0 0.0
        %1485 = vmatpush1.msra.mxu0 0.0
        %1486 = vmatprep.subr.mxu0 0.0
        %1487 = vmatpush1.msra.mxu0 0.0
        %1488 = vmatprep.mubr.f32.mxu0 0.0
        %1489 = vmatmul.mubr.f32.gmra.mrb[0].mxu0 %v1422
        %v1490 = vpop.f32.mrb[0].mxu0
        %v1491 = vadd.f32 %v1419, %v1490
        %v1492 = vpop.f32.mrb[0].mxu0
        %1493 = vdwg.mxu0
        %v1494 = vadd.f32 %v1491, %v560
        %v1495 = vld [vmem:[%s8] sm:$0x1]
        %v1496 = vld [vmem:[%s9] sm:$0x1]
        %v1497 = vsel %vm572, %v1494, 0.0
        %1498 = vadd.xlane.f32.xlu0 %v1497
        %v1499 = vpop.xlane.xlu0 %1498
        %v1500 = vrcp.pop 32.0
        %v1501 = vmul.f32 %v1499, %v1500
        %v1502 = vsub.f32 %v1494, %v1501
        %v1503 = vmul.f32 %v1502, %v1502
        %v1504 = vsel %vm572, %v1503, 0.0
        %1505 = vadd.xlane.f32.xlu0 %v1504
        %v1506 = vpop.xlane.xlu0 %1505
        %v1507 = vmul.f32 %v1506, %v1500
        %v1508 = vadd.f32 %v1507, 1e-05
        %v1509 = vrsqrt.pop %v1508
        %v1510 = vmul.f32 %v1502, %v1509
        %v1512 = vlaneseq
        %v1513 = vshrl.u32 %v1512, 7
        %v1514 = vsub.s32 0, %v1513
        %v1515 = vrot.slane %v1495, %v1514
        %v1517 = vmul.f32 %v1510, %v1515
        %v1519 = vlaneseq
        %v1520 = vshrl.u32 %v1519, 7
        %v1521 = vsub.s32 0, %v1520
        %v1522 = vrot.slane %v1496, %v1521
        %v1524 = vadd.f32 %v1517, %v1522
        %v1525 = vld [vmem:[%s10] sm:$0xff]
        %v1526 = vld [vmem:[%s10 + $0x8] sm:$0xff]
        %v1527 = vld [vmem:[%s10 + $0x10] sm:$0xff]
        %v1528 = vld [vmem:[%s10 + $0x18] sm:$0xff]
        %v1529 = vld [vmem:[%s11] sm:$0x1]
        %v1531 = vlaneseq
        %v1532 = vshrl.u32 %v1531, 7
        %v1533 = vsub.s32 0, %v1532
        %v1534 = vrot.slane %v1529, %v1533
        %v1537 = vsel %vm572, %v1524, 0
        %1539 = vmatprep.subr.mxu0 0.0
        %1540 = vmatpush1.msra.mxu0 %v1525
        %1541 = vmatprep.subr.mxu0 0.0
        %1542 = vmatpush1.msra.mxu0 %v1526
        %1543 = vmatprep.subr.mxu0 0.0
        %1544 = vmatpush1.msra.mxu0 %v1527
        %1545 = vmatprep.subr.mxu0 0.0
        %1546 = vmatpush1.msra.mxu0 %v1528
        %1547 = vmatprep.subr.mxu0 0.0
        %1548 = vmatpush1.msra.mxu0 0.0
        %1549 = vmatprep.subr.mxu0 0.0
        %1550 = vmatpush1.msra.mxu0 0.0
        %1551 = vmatprep.subr.mxu0 0.0
        %1552 = vmatpush1.msra.mxu0 0.0
        %1553 = vmatprep.subr.mxu0 0.0
        %1554 = vmatpush1.msra.mxu0 0.0
        %1555 = vmatprep.subr.mxu0 0.0
        %1556 = vmatpush1.msra.mxu0 0.0
        %1557 = vmatprep.subr.mxu0 0.0
        %1558 = vmatpush1.msra.mxu0 0.0
        %1559 = vmatprep.subr.mxu0 0.0
        %1560 = vmatpush1.msra.mxu0 0.0
        %1561 = vmatprep.subr.mxu0 0.0
        %1562 = vmatpush1.msra.mxu0 0.0
        %1563 = vmatprep.subr.mxu0 0.0
        %1564 = vmatpush1.msra.mxu0 0.0
        %1565 = vmatprep.subr.mxu0 0.0
        %1566 = vmatpush1.msra.mxu0 0.0
        %1567 = vmatprep.subr.mxu0 0.0
        %1568 = vmatpush1.msra.mxu0 0.0
        %1569 = vmatprep.subr.mxu0 0.0
        %1570 = vmatpush1.msra.mxu0 0.0
        %1571 = vmatprep.subr.mxu0 0.0
        %1572 = vmatpush1.msra.mxu0 0.0
        %1573 = vmatprep.subr.mxu0 0.0
        %1574 = vmatpush1.msra.mxu0 0.0
        %1575 = vmatprep.subr.mxu0 0.0
        %1576 = vmatpush1.msra.mxu0 0.0
        %1577 = vmatprep.subr.mxu0 0.0
        %1578 = vmatpush1.msra.mxu0 0.0
        %1579 = vmatprep.subr.mxu0 0.0
        %1580 = vmatpush1.msra.mxu0 0.0
        %1581 = vmatprep.subr.mxu0 0.0
        %1582 = vmatpush1.msra.mxu0 0.0
        %1583 = vmatprep.subr.mxu0 0.0
        %1584 = vmatpush1.msra.mxu0 0.0
        %1585 = vmatprep.subr.mxu0 0.0
        %1586 = vmatpush1.msra.mxu0 0.0
        %1587 = vmatprep.subr.mxu0 0.0
        %1588 = vmatpush1.msra.mxu0 0.0
        %1589 = vmatprep.subr.mxu0 0.0
        %1590 = vmatpush1.msra.mxu0 0.0
        %1591 = vmatprep.subr.mxu0 0.0
        %1592 = vmatpush1.msra.mxu0 0.0
        %1593 = vmatprep.subr.mxu0 0.0
        %1594 = vmatpush1.msra.mxu0 0.0
        %1595 = vmatprep.subr.mxu0 0.0
        %1596 = vmatpush1.msra.mxu0 0.0
        %1597 = vmatprep.subr.mxu0 0.0
        %1598 = vmatpush1.msra.mxu0 0.0
        %1599 = vmatprep.subr.mxu0 0.0
        %1600 = vmatpush1.msra.mxu0 0.0
        %1601 = vmatprep.subr.mxu0 0.0
        %1602 = vmatpush1.msra.mxu0 0.0
        %1603 = vmatprep.mubr.f32.mxu0 0.0
        %1604 = vmatmul.mubr.f32.gmra.mrb[0].mxu0 %v1537
        %v1605 = vpop.f32.mrb[0].mxu0
        %v1606 = vadd.f32 %v1534, %v1605
        %v1607 = vpop.f32.mrb[0].mxu0
        %1608 = vdwg.mxu0
        %v1609 = vmax.f32 %v1606, 0.0
        %v1610 = vld [vmem:[%s12] sm:$0xff]
        %v1611 = vld [vmem:[%s12 + $0x8] sm:$0xff]
        %v1612 = vld [vmem:[%s12 + $0x10] sm:$0xff]
        %v1613 = vld [vmem:[%s12 + $0x18] sm:$0xff]
        %v1614 = vld [vmem:[%s12 + $0x20] sm:$0xff]
        %v1615 = vld [vmem:[%s12 + $0x28] sm:$0xff]
        %v1616 = vld [vmem:[%s12 + $0x30] sm:$0xff]
        %v1617 = vld [vmem:[%s12 + $0x38] sm:$0xff]
        %v1618 = vld [vmem:[%s12 + $0x40] sm:$0xff]
        %v1619 = vld [vmem:[%s12 + $0x48] sm:$0xff]
        %v1620 = vld [vmem:[%s12 + $0x50] sm:$0xff]
        %v1621 = vld [vmem:[%s12 + $0x58] sm:$0xff]
        %v1622 = vld [vmem:[%s12 + $0x60] sm:$0xff]
        %v1623 = vld [vmem:[%s12 + $0x68] sm:$0xff]
        %v1624 = vld [vmem:[%s12 + $0x70] sm:$0xff]
        %v1625 = vld [vmem:[%s12 + $0x78] sm:$0xff]
        %v1626 = vld [vmem:[%s13] sm:$0x1]
        %v1628 = vlaneseq
        %v1629 = vshrl.u32 %v1628, 7
        %v1630 = vsub.s32 0, %v1629
        %v1631 = vrot.slane %v1626, %v1630
        %1633 = vmatprep.subr.mxu0 0.0
        %1634 = vmatpush1.msra.mxu0 %v1610
        %1635 = vmatprep.subr.mxu0 0.0
        %1636 = vmatpush1.msra.mxu0 %v1611
        %1637 = vmatprep.subr.mxu0 0.0
        %1638 = vmatpush1.msra.mxu0 %v1612
        %1639 = vmatprep.subr.mxu0 0.0
        %1640 = vmatpush1.msra.mxu0 %v1613
        %1641 = vmatprep.subr.mxu0 0.0
        %1642 = vmatpush1.msra.mxu0 %v1614
        %1643 = vmatprep.subr.mxu0 0.0
        %1644 = vmatpush1.msra.mxu0 %v1615
        %1645 = vmatprep.subr.mxu0 0.0
        %1646 = vmatpush1.msra.mxu0 %v1616
        %1647 = vmatprep.subr.mxu0 0.0
        %1648 = vmatpush1.msra.mxu0 %v1617
        %1649 = vmatprep.subr.mxu0 0.0
        %1650 = vmatpush1.msra.mxu0 %v1618
        %1651 = vmatprep.subr.mxu0 0.0
        %1652 = vmatpush1.msra.mxu0 %v1619
        %1653 = vmatprep.subr.mxu0 0.0
        %1654 = vmatpush1.msra.mxu0 %v1620
        %1655 = vmatprep.subr.mxu0 0.0
        %1656 = vmatpush1.msra.mxu0 %v1621
        %1657 = vmatprep.subr.mxu0 0.0
        %1658 = vmatpush1.msra.mxu0 %v1622
        %1659 = vmatprep.subr.mxu0 0.0
        %1660 = vmatpush1.msra.mxu0 %v1623
        %1661 = vmatprep.subr.mxu0 0.0
        %1662 = vmatpush1.msra.mxu0 %v1624
        %1663 = vmatprep.subr.mxu0 0.0
        %1664 = vmatpush1.msra.mxu0 %v1625
        %1665 = vmatprep.subr.mxu0 0.0
        %1666 = vmatpush1.msra.mxu0 0.0
        %1667 = vmatprep.subr.mxu0 0.0
        %1668 = vmatpush1.msra.mxu0 0.0
        %1669 = vmatprep.subr.mxu0 0.0
        %1670 = vmatpush1.msra.mxu0 0.0
        %1671 = vmatprep.subr.mxu0 0.0
        %1672 = vmatpush1.msra.mxu0 0.0
        %1673 = vmatprep.subr.mxu0 0.0
        %1674 = vmatpush1.msra.mxu0 0.0
        %1675 = vmatprep.subr.mxu0 0.0
        %1676 = vmatpush1.msra.mxu0 0.0
        %1677 = vmatprep.subr.mxu0 0.0
        %1678 = vmatpush1.msra.mxu0 0.0
        %1679 = vmatprep.subr.mxu0 0.0
        %1680 = vmatpush1.msra.mxu0 0.0
        %1681 = vmatprep.subr.mxu0 0.0
        %1682 = vmatpush1.msra.mxu0 0.0
        %1683 = vmatprep.subr.mxu0 0.0
        %1684 = vmatpush1.msra.mxu0 0.0
        %1685 = vmatprep.subr.mxu0 0.0
        %1686 = vmatpush1.msra.mxu0 0.0
        %1687 = vmatprep.subr.mxu0 0.0
        %1688 = vmatpush1.msra.mxu0 0.0
        %1689 = vmatprep.subr.mxu0 0.0
        %1690 = vmatpush1.msra.mxu0 0.0
        %1691 = vmatprep.subr.mxu0 0.0
        %1692 = vmatpush1.msra.mxu0 0.0
        %1693 = vmatprep.subr.mxu0 0.0
        %1694 = vmatpush1.msra.mxu0 0.0
        %1695 = vmatprep.subr.mxu0 0.0
        %1696 = vmatpush1.msra.mxu0 0.0
        %1697 = vmatprep.mubr.f32.mxu0 0.0
        %1698 = vmatmul.mubr.f32.gmra.mrb[0].mxu0 %v1609
        %v1699 = vpop.f32.mrb[0].mxu0
        %v1700 = vadd.f32 %v1631, %v1699
        %v1701 = vpop.f32.mrb[0].mxu0
        %1702 = vdwg.mxu0
        %v1703 = vadd.f32 %v1700, %v1524
        %v1704 = vld [vmem:[%s14] sm:$0x1]
        %v1705 = vld [vmem:[%s15] sm:$0x1]
        %v1706 = vsel %vm572, %v1703, 0.0
        %1707 = vadd.xlane.f32.xlu0 %v1706
        %v1708 = vpop.xlane.xlu0 %1707
        %v1709 = vmul.f32 %v1708, %v1500
        %v1710 = vsub.f32 %v1703, %v1709
        %v1711 = vmul.f32 %v1710, %v1710
        %v1712 = vsel %vm572, %v1711, 0.0
        %1713 = vadd.xlane.f32.xlu0 %v1712
        %v1714 = vpop.xlane.xlu0 %1713
        %v1715 = vmul.f32 %v1714, %v1500
        %v1716 = vadd.f32 %v1715, 1e-05
        %v1717 = vrsqrt.pop %v1716
        %v1718 = vmul.f32 %v1710, %v1717
        %v1720 = vlaneseq
        %v1721 = vshrl.u32 %v1720, 7
        %v1722 = vsub.s32 0, %v1721
        %v1723 = vrot.slane %v1704, %v1722
        %v1725 = vmul.f32 %v1718, %v1723
        %v1727 = vlaneseq
        %v1728 = vshrl.u32 %v1727, 7
        %v1729 = vsub.s32 0, %v1728
        %v1730 = vrot.slane %v1705, %v1729
        %v1732 = vadd.f32 %v1725, %v1730
        %1733 = vst.msk [vmem:[%s547] sm:$0xff] %vm572, %v1732
        %s1734 = sand.u32 %s400, 1
        %s1735 = scalar_lea.sflag [#allocation3], %s1734
        %s1736 = sand.u32 %s400, 1
        %s1737 = smul.addr %s1736, 8
        %s1738 = scalar_lea.vmem [#allocation2], %s1737
        // Predicated region
        $region85: #{tpu_custom_call.1} parent=83 // pred_check
          %p1739 = pneg %p410
        $region86: #{tpu_custom_call.1} parent=83 // pred_check_branch
          %1741 = sbr.rel (%p1739) target = $region88
        $region87: #{tpu_custom_call.1} parent=83 // pred_region
          %s1743 = ssub.s32 128, 128
          %1744 = vsyncadd %s1735, %s1743
          %s1745 = sadd.s32 %s35, %s34
          %s1746 = smul.addr %s1745, 128
          %s1747 = scalar_lea.hbm %s16, %s1746
          %s1749 = sshll.u32 %s1738, 4
          %s1750 = int_to_ptr.vmem [resolvable:$true] %s1749
          %1752 = dma.vmem_to_hbm [thread:$0]  %s1750, 128, %s1747, %s1735
        $region88: #{tpu_custom_call.1} parent=83 // pred_fallthru
          _
      $region84: #{tpu_custom_call.1} parent=5 // pred_fallthru
        _
      %p1753 = scmp.le.s32.totalorder 2, %s25
      // Predicated region
      $region89: #{tpu_custom_call.1} parent=5 // pred_check
        %p1754 = pneg %p1753
      $region90: #{tpu_custom_call.1} parent=5 // pred_check_branch
        %1756 = sbr.rel (%p1754) target = $region92
      $region91: #{tpu_custom_call.1} parent=5 // pred_region
        %s1757 = ssub.s32 %s25, 2
        // Predicated region
        $region93: #{tpu_custom_call.1} parent=91 // pred_check
          %p1758 = pneg %p416
        $region94: #{tpu_custom_call.1} parent=91 // pred_check_branch
          %1760 = sbr.rel (%p1758) target = $region96
        $region95: #{tpu_custom_call.1} parent=91 // pred_region
          %s1761 = sand.u32 %s401, 1
          %s1762 = scalar_lea.sflag [#allocation3], %s1761
          %s1763 = sand.u32 %s401, 1
          %s1764 = smul.addr %s1763, 8
          %s1765 = scalar_lea.vmem [#allocation2], %s1764
          %1766 = dma.done %s1762, 128
        $region96: #{tpu_custom_call.1} parent=91 // pred_fallthru
          _
      $region92: #{tpu_custom_call.1} parent=5 // pred_fallthru
        _
    $region6: #{tpu_custom_call.1} parent=1 // loop_footer
      %s29 = sadd.s32 1, %s25
    $region7: #{tpu_custom_call.1} parent=1 // loop_footer_branch
      %24 = sbr.rel target = $region3
    $region8: #{tpu_custom_call.1} parent=1 // loop_exit
      _
    %1767 = vsyncpa [#allocation3], 1
    %s1768 = scalar_lea.sflag [#allocation3], 1
    %1769 = vsyncpa %s1768, 1

</llo_original>
